<compile_context>
chip_gen: v5e
topology: v5e:2x2
jax: 0.10.0
libtpu: 0.0.40
codegen_flags: <defaults>
</compile_context>

<pallas_src>
import functools

import jax
import jax.numpy as jnp
from jax.experimental import pallas as pl
from jax.experimental.pallas import tpu as pltpu

BN_EPS = 1e-5
NEG_SLOPE = 0.2


def _residual_block_kernel(*refs, N, H, W, K, channels):
    """Fused forward of the whole residual block.

    refs = [xpad, xres] + [B_i, P_i, gamma_i, beta_i per layer] + [out] + pads
      xpad : (N, H+K-1, (W+K-1)*C0)  zero-padded, lane-packed input
      xres : (N*H, W*C0)             un-padded input rows (identity skip)
      B_i  : (K, (W+K-1)*Cin_i, W*Cout_i)  banded conv weights (one per dy)
      P_i  : (W*Cout_i, W*Cout_i)  per-channel fold/broadcast matrix (has 1/M)
      g/b  : (1, W*Cout_i)  BN affine params pre-tiled to the lane layout
      out  : (N*H, W*C_last)
      pads : one (N, H+K-1, (W+K-1)*Cout_i) VMEM scratch per hidden layer
    """
    n_layers = len(channels) - 1
    pad = (K - 1) // 2

    xpad_ref = refs[0]
    xres_ref = refs[1]
    layer_refs = refs[2:2 + 4 * n_layers]
    out_ref = refs[2 + 4 * n_layers]
    pad_refs = refs[3 + 4 * n_layers:]

    def conv(src_ref, b_ref, cin, cout):
        # src: (N, H+K-1, (W+K-1)*cin); conv = K shifted-row banded matmuls.
        wp_cin = (W + K - 1) * cin
        acc = None
        for dy in range(K):
            a = src_ref[:, dy:dy + H, :].reshape(N * H, wp_cin)
            t = jnp.dot(a, b_ref[dy], preferred_element_type=jnp.float32)
            acc = t if acc is None else acc + t
        return acc  # (N*H, W*cout)

    def batchnorm(y, p_ref, g_ref, be_ref, act):
        # One-pass training-mode BN: per-lane sum and sum-of-squares, folded
        # and re-broadcast per channel by a matmul (P carries the 1/M scale).
        mean = jnp.dot(jnp.sum(y, axis=0, keepdims=True), p_ref[...],
                       preferred_element_type=jnp.float32)
        mean_sq = jnp.dot(jnp.sum(y * y, axis=0, keepdims=True), p_ref[...],
                          preferred_element_type=jnp.float32)
        inv_std = jax.lax.rsqrt(mean_sq - mean * mean + BN_EPS)
        y = (y - mean) * (inv_std * g_ref[...]) + be_ref[...]
        if act:  # LeakyReLU(0.2) after every conv except the last
            y = jnp.where(y > 0.0, y, NEG_SLOPE * y)
        return y

    src = xpad_ref
    cin = channels[0]
    y = None
    for i in range(n_layers):
        b_ref, p_ref, g_ref, be_ref = layer_refs[4 * i:4 * i + 4]
        cout = channels[i + 1]
        last = i == n_layers - 1
        y = conv(src, b_ref, cin, cout)
        y = batchnorm(y, p_ref, g_ref, be_ref, act=not last)
        if not last:
            # Spatially re-pad into the VMEM scratch slab for the next layer.
            pr = pad_refs[i]
            pr[...] = jnp.zeros(pr.shape, pr.dtype)
            pr[:, pad:pad + H, pad * cout:(pad + W) * cout] = (
                y.reshape(N, H, W * cout))
            src, cin = pr, cout

    # Identity shortcut: plain elementwise add with the lane-dense input rows.
    out_ref[...] = (y + xres_ref[...]).astype(out_ref.dtype)


def _banded_weights(w_hwio, W):
    """(K,K,Cin,Cout) HWIO conv weights -> K block-banded matrices B so that
    conv(xpad)[n,h] = sum_dy xpad_row(n, h+dy) @ B[dy] in the lane-packed
    (w*C + c) layout."""
    K, K2, cin, cout = w_hwio.shape
    assert K == K2
    wp = W + K - 1
    # sel[dx, p, w] = 1 iff p == w + dx
    sel = (jnp.arange(wp)[None, :, None]
           == jnp.arange(W)[None, None, :] + jnp.arange(K)[:, None, None]
           ).astype(w_hwio.dtype)
    band = jnp.einsum("dpw,ydio->ypiwo", sel, w_hwio)  # (K, wp, cin, W, cout)
    return band.reshape(K, wp * cin, W * cout)


def _channel_fold_matrix(W, c, m):
    """(W*c, W*c): folds lane-sums per channel and broadcasts them back to
    every lane of that channel, scaled by 1/m (m = N*H*W)."""
    lane_ch = jnp.arange(W * c) % c
    return (lane_ch[:, None] == lane_ch[None, :]).astype(jnp.float32) / float(m)


def residual_block_2d(x_nchw, params, paddings):
    """ResidualBlock2d.forward: out = layers(x) + x (identity shortcut, no
    last nonlinearity), fused into one Pallas kernel."""
    N, C0, H, W = x_nchw.shape
    channels = [params[0][0].shape[2]] + [p[0].shape[3] for p in params]
    assert channels[0] == C0 and channels[0] == channels[-1]
    K = params[0][0].shape[0]
    for (w, _, _, _), p in zip(params, paddings):
        assert w.shape[0] == w.shape[1] == K, "square, equal kernels only"
        assert p == (K - 1) // 2, "stride-1 same-padding convs only"
    pad = (K - 1) // 2
    M = N * H * W

    # Lane-packed, spatially padded input slab: (N, H+K-1, (W+K-1)*C0),
    # plus the un-padded rows for the identity skip: (N*H, W*C0).
    x_nhwc = jnp.transpose(x_nchw, (0, 2, 3, 1))
    x_rows = x_nhwc.reshape(N * H, W * C0)
    xpad = jnp.pad(x_nhwc, ((0, 0), (pad, pad), (pad, pad), (0, 0)))
    xpad = xpad.reshape(N, H + K - 1, (W + K - 1) * C0)

    args = [xpad, x_rows]
    for (w, _b, gamma, beta) in params:  # conv bias dropped: cancels in BN
        cout = w.shape[3]
        args.append(_banded_weights(w, W))
        args.append(_channel_fold_matrix(W, cout, M))
        args.append(jnp.tile(gamma.reshape(1, cout), (1, W)))
        args.append(jnp.tile(beta.reshape(1, cout), (1, W)))

    kernel = functools.partial(
        _residual_block_kernel, N=N, H=H, W=W, K=K, channels=tuple(channels))
    out = pl.pallas_call(
        kernel,
        out_shape=jax.ShapeDtypeStruct((N * H, W * channels[-1]), jnp.float32),
        in_specs=[pl.BlockSpec(memory_space=pltpu.MemorySpace.VMEM)] * len(args),
        out_specs=pl.BlockSpec(memory_space=pltpu.MemorySpace.VMEM),
        scratch_shapes=[
            pltpu.VMEM((N, H + K - 1, (W + K - 1) * channels[i + 1]),
                       jnp.float32)
            for i in range(len(channels) - 2)
        ],
    )(*args)

    out = out.reshape(N, H, W, channels[-1])
    return jnp.transpose(out, (0, 3, 1, 2))


def _reference(x, params, paddings):
    """Pure-JAX reference matching PyTorch semantics (training-mode BN,
    including the conv bias that the kernel omits because it cancels)."""
    out = x
    n = len(params)
    for i, (w, b, g, be) in enumerate(params):
        out = jax.lax.conv_general_dilated(
            out, w, window_strides=(1, 1),
            padding=[(paddings[i], paddings[i])] * 2,
            dimension_numbers=("NCHW", "HWIO", "NCHW"),
        )
        out = out + b.reshape(1, -1, 1, 1)
        mean = out.mean(axis=(0, 2, 3), keepdims=True)
        var = ((out - mean) ** 2).mean(axis=(0, 2, 3), keepdims=True)
        out = (out - mean) * jax.lax.rsqrt(var + BN_EPS)
        out = out * g.reshape(1, -1, 1, 1) + be.reshape(1, -1, 1, 1)
        if i != n - 1:
            out = jnp.where(out > 0, out, NEG_SLOPE * out)
    return out + x


if __name__ == "__main__":
    filters = [4, 8, 8, 4]
    kernels = [3, 3, 3]
    paddings = [1, 1, 1]

    key = jax.random.PRNGKey(0)
    keys = jax.random.split(key, 4 * len(kernels) + 1)

    params = []
    for i in range(len(kernels)):
        cin, cout, k = filters[i], filters[i + 1], kernels[i]
        w = 0.1 * jax.random.normal(keys[4 * i], (k, k, cin, cout), jnp.float32)
        b = 0.05 * jax.random.normal(keys[4 * i + 1], (cout,), jnp.float32)
        gamma = 1.0 + 0.1 * jax.random.normal(keys[4 * i + 2], (cout,), jnp.float32)
        beta = 0.1 * jax.random.normal(keys[4 * i + 3], (cout,), jnp.float32)
        params.append((w, b, gamma, beta))

    x = jax.random.normal(keys[-1], (2, 4, 16, 16), jnp.float32)  # NCHW

    fwd = jax.jit(functools.partial(residual_block_2d, paddings=tuple(paddings)))
    out = jax.block_until_ready(fwd(x, params))

    ref = jax.block_until_ready(_reference(x, params, paddings))
    assert out.shape == (2, 4, 16, 16)
    assert jnp.allclose(out, ref, atol=2e-4, rtol=2e-4), "mismatch vs JAX reference"

    print("KERNEL_OK")
</pallas_src>

<mosaic_0001>
module attributes {stable_mosaic.version = 11 : i64} {
  func.func @_residual_block_kernel(%arg0: memref<2x18x72xf32, #tpu.memory_space<vmem>>, %arg1: memref<32x64xf32, #tpu.memory_space<vmem>>, %arg2: memref<3x72x128xf32, #tpu.memory_space<vmem>>, %arg3: memref<128x128xf32, #tpu.memory_space<vmem>>, %arg4: memref<1x128xf32, #tpu.memory_space<vmem>>, %arg5: memref<1x128xf32, #tpu.memory_space<vmem>>, %arg6: memref<3x144x128xf32, #tpu.memory_space<vmem>>, %arg7: memref<128x128xf32, #tpu.memory_space<vmem>>, %arg8: memref<1x128xf32, #tpu.memory_space<vmem>>, %arg9: memref<1x128xf32, #tpu.memory_space<vmem>>, %arg10: memref<3x144x64xf32, #tpu.memory_space<vmem>>, %arg11: memref<64x64xf32, #tpu.memory_space<vmem>>, %arg12: memref<1x64xf32, #tpu.memory_space<vmem>>, %arg13: memref<1x64xf32, #tpu.memory_space<vmem>>, %arg14: memref<32x64xf32, #tpu.memory_space<vmem>>, %arg15: memref<2x18x144xf32, #tpu.memory_space<vmem>>, %arg16: memref<2x18x144xf32, #tpu.memory_space<vmem>>) attributes {dimension_semantics = [], scalar_prefetch = 0 : i64, scratch_operands = 2 : i64, tpu.core_type = #tpu.core_type<tc>} {
    %c0 = arith.constant 0 : index
    %c0_0 = arith.constant 0 : index
    %c0_1 = arith.constant 0 : index
    %0 = vector.load %arg0[%c0, %c0_0, %c0_1] : memref<2x18x72xf32, #tpu.memory_space<vmem>>, vector<2x16x72xf32>
    %1 = vector.shape_cast %0 : vector<2x16x72xf32> to vector<32x72xf32>
    %c0_2 = arith.constant 0 : index
    %c0_3 = arith.constant 0 : index
    %c0_4 = arith.constant 0 : index
    %2 = vector.load %arg2[%c0_2, %c0_3, %c0_4] : memref<3x72x128xf32, #tpu.memory_space<vmem>>, vector<1x72x128xf32>
    %3 = vector.shape_cast %2 : vector<1x72x128xf32> to vector<72x128xf32>
    %cst = arith.constant dense<0.000000e+00> : vector<32x128xf32>
    %4 = tpu.matmul %1, %3, %cst {dimension_numbers = #tpu.dot_dimension_numbers<[1], [0], [0], [1], [0, 0, 1, 1], [], []>} : vector<32x72xf32>, vector<72x128xf32>, vector<32x128xf32> -> vector<32x128xf32>
    %c0_5 = arith.constant 0 : index
    %c1 = arith.constant 1 : index
    %c0_6 = arith.constant 0 : index
    %5 = vector.load %arg0[%c0_5, %c1, %c0_6] : memref<2x18x72xf32, #tpu.memory_space<vmem>>, vector<2x16x72xf32>
    %6 = vector.shape_cast %5 : vector<2x16x72xf32> to vector<32x72xf32>
    %c1_7 = arith.constant 1 : index
    %c0_8 = arith.constant 0 : index
    %c0_9 = arith.constant 0 : index
    %7 = vector.load %arg2[%c1_7, %c0_8, %c0_9] : memref<3x72x128xf32, #tpu.memory_space<vmem>>, vector<1x72x128xf32>
    %8 = vector.shape_cast %7 : vector<1x72x128xf32> to vector<72x128xf32>
    %cst_10 = arith.constant dense<0.000000e+00> : vector<32x128xf32>
    %9 = tpu.matmul %6, %8, %cst_10 {dimension_numbers = #tpu.dot_dimension_numbers<[1], [0], [0], [1], [0, 0, 1, 1], [], []>} : vector<32x72xf32>, vector<72x128xf32>, vector<32x128xf32> -> vector<32x128xf32>
    %10 = arith.addf %4, %9 : vector<32x128xf32>
    %c0_11 = arith.constant 0 : index
    %c2 = arith.constant 2 : index
    %c0_12 = arith.constant 0 : index
    %11 = vector.load %arg0[%c0_11, %c2, %c0_12] : memref<2x18x72xf32, #tpu.memory_space<vmem>>, vector<2x16x72xf32>
    %12 = vector.shape_cast %11 : vector<2x16x72xf32> to vector<32x72xf32>
    %c2_13 = arith.constant 2 : index
    %c0_14 = arith.constant 0 : index
    %c0_15 = arith.constant 0 : index
    %13 = vector.load %arg2[%c2_13, %c0_14, %c0_15] : memref<3x72x128xf32, #tpu.memory_space<vmem>>, vector<1x72x128xf32>
    %14 = vector.shape_cast %13 : vector<1x72x128xf32> to vector<72x128xf32>
    %cst_16 = arith.constant dense<0.000000e+00> : vector<32x128xf32>
    %15 = tpu.matmul %12, %14, %cst_16 {dimension_numbers = #tpu.dot_dimension_numbers<[1], [0], [0], [1], [0, 0, 1, 1], [], []>} : vector<32x72xf32>, vector<72x128xf32>, vector<32x128xf32> -> vector<32x128xf32>
    %16 = arith.addf %10, %15 : vector<32x128xf32>
    %cst_17 = arith.constant dense<0.000000e+00> : vector<128xf32>
    %17 = vector.multi_reduction <add>, %16, %cst_17 [0] : vector<32x128xf32> to vector<128xf32>
    %18 = vector.shape_cast %17 : vector<128xf32> to vector<1x128xf32>
    %c0_18 = arith.constant 0 : index
    %c0_19 = arith.constant 0 : index
    %19 = vector.load %arg3[%c0_18, %c0_19] : memref<128x128xf32, #tpu.memory_space<vmem>>, vector<128x128xf32>
    %cst_20 = arith.constant dense<0.000000e+00> : vector<1x128xf32>
    %20 = tpu.matmul %18, %19, %cst_20 {dimension_numbers = #tpu.dot_dimension_numbers<[1], [0], [0], [1], [0, 0, 1, 1], [], []>} : vector<1x128xf32>, vector<128x128xf32>, vector<1x128xf32> -> vector<1x128xf32>
    %21 = arith.mulf %16, %16 : vector<32x128xf32>
    %cst_21 = arith.constant dense<0.000000e+00> : vector<128xf32>
    %22 = vector.multi_reduction <add>, %21, %cst_21 [0] : vector<32x128xf32> to vector<128xf32>
    %23 = vector.shape_cast %22 : vector<128xf32> to vector<1x128xf32>
    %c0_22 = arith.constant 0 : index
    %c0_23 = arith.constant 0 : index
    %24 = vector.load %arg3[%c0_22, %c0_23] : memref<128x128xf32, #tpu.memory_space<vmem>>, vector<128x128xf32>
    %cst_24 = arith.constant dense<0.000000e+00> : vector<1x128xf32>
    %25 = tpu.matmul %23, %24, %cst_24 {dimension_numbers = #tpu.dot_dimension_numbers<[1], [0], [0], [1], [0, 0, 1, 1], [], []>} : vector<1x128xf32>, vector<128x128xf32>, vector<1x128xf32> -> vector<1x128xf32>
    %26 = arith.mulf %20, %20 : vector<1x128xf32>
    %27 = arith.subf %25, %26 : vector<1x128xf32>
    %cst_25 = arith.constant 9.99999974E-6 : f32
    %28 = vector.broadcast %cst_25 : f32 to vector<1x128xf32>
    %29 = arith.addf %27, %28 : vector<1x128xf32>
    %30 = math.rsqrt %29 : vector<1x128xf32>
    %31 = vector.broadcast %20 : vector<1x128xf32> to vector<32x128xf32>
    %32 = arith.subf %16, %31 : vector<32x128xf32>
    %c0_26 = arith.constant 0 : index
    %c0_27 = arith.constant 0 : index
    %33 = vector.load %arg4[%c0_26, %c0_27] : memref<1x128xf32, #tpu.memory_space<vmem>>, vector<1x128xf32>
    %34 = arith.mulf %30, %33 : vector<1x128xf32>
    %35 = vector.broadcast %34 : vector<1x128xf32> to vector<32x128xf32>
    %36 = arith.mulf %32, %35 : vector<32x128xf32>
    %c0_28 = arith.constant 0 : index
    %c0_29 = arith.constant 0 : index
    %37 = vector.load %arg5[%c0_28, %c0_29] : memref<1x128xf32, #tpu.memory_space<vmem>>, vector<1x128xf32>
    %38 = vector.broadcast %37 : vector<1x128xf32> to vector<32x128xf32>
    %39 = arith.addf %36, %38 : vector<32x128xf32>
    %cst_30 = arith.constant 0.000000e+00 : f32
    %40 = vector.broadcast %cst_30 : f32 to vector<32x128xf32>
    %41 = arith.cmpf ogt, %39, %40 : vector<32x128xf32>
    %cst_31 = arith.constant 2.000000e-01 : f32
    %42 = vector.broadcast %cst_31 : f32 to vector<32x128xf32>
    %43 = arith.mulf %42, %39 : vector<32x128xf32>
    %44 = arith.select %41, %39, %43 : vector<32x128xi1>, vector<32x128xf32>
    %cst_32 = arith.constant 0.000000e+00 : f32
    %45 = vector.broadcast %cst_32 : f32 to vector<2x18x144xf32>
    %c0_33 = arith.constant 0 : index
    %c0_34 = arith.constant 0 : index
    %c0_35 = arith.constant 0 : index
    %46 = vector.load %arg15[%c0_33, %c0_34, %c0_35] : memref<2x18x144xf32, #tpu.memory_space<vmem>>, vector<2x18x144xf32>
    tpu.vector_store %arg15[%c0_33, %c0_34, %c0_35], %45 {strides = array<i32>} : memref<2x18x144xf32, #tpu.memory_space<vmem>>, vector<2x18x144xf32>,
    %47 = vector.shape_cast %44 : vector<32x128xf32> to vector<2x16x128xf32>
    %c0_36 = arith.constant 0 : index
    %c1_37 = arith.constant 1 : index
    %c8 = arith.constant 8 : index
    %48 = vector.load %arg15[%c0_36, %c1_37, %c8] : memref<2x18x144xf32, #tpu.memory_space<vmem>>, vector<2x16x128xf32>
    tpu.vector_store %arg15[%c0_36, %c1_37, %c8], %47 {strides = array<i32>} : memref<2x18x144xf32, #tpu.memory_space<vmem>>, vector<2x16x128xf32>,
    %c0_38 = arith.constant 0 : index
    %c0_39 = arith.constant 0 : index
    %c0_40 = arith.constant 0 : index
    %49 = vector.load %arg15[%c0_38, %c0_39, %c0_40] : memref<2x18x144xf32, #tpu.memory_space<vmem>>, vector<2x16x144xf32>
    %50 = vector.shape_cast %49 : vector<2x16x144xf32> to vector<32x144xf32>
    %c0_41 = arith.constant 0 : index
    %c0_42 = arith.constant 0 : index
    %c0_43 = arith.constant 0 : index
    %51 = vector.load %arg6[%c0_41, %c0_42, %c0_43] : memref<3x144x128xf32, #tpu.memory_space<vmem>>, vector<1x144x128xf32>
    %52 = vector.shape_cast %51 : vector<1x144x128xf32> to vector<144x128xf32>
    %cst_44 = arith.constant dense<0.000000e+00> : vector<32x128xf32>
    %53 = tpu.matmul %50, %52, %cst_44 {dimension_numbers = #tpu.dot_dimension_numbers<[1], [0], [0], [1], [0, 0, 1, 1], [], []>} : vector<32x144xf32>, vector<144x128xf32>, vector<32x128xf32> -> vector<32x128xf32>
    %c0_45 = arith.constant 0 : index
    %c1_46 = arith.constant 1 : index
    %c0_47 = arith.constant 0 : index
    %54 = vector.load %arg15[%c0_45, %c1_46, %c0_47] : memref<2x18x144xf32, #tpu.memory_space<vmem>>, vector<2x16x144xf32>
    %55 = vector.shape_cast %54 : vector<2x16x144xf32> to vector<32x144xf32>
    %c1_48 = arith.constant 1 : index
    %c0_49 = arith.constant 0 : index
    %c0_50 = arith.constant 0 : index
    %56 = vector.load %arg6[%c1_48, %c0_49, %c0_50] : memref<3x144x128xf32, #tpu.memory_space<vmem>>, vector<1x144x128xf32>
    %57 = vector.shape_cast %56 : vector<1x144x128xf32> to vector<144x128xf32>
    %cst_51 = arith.constant dense<0.000000e+00> : vector<32x128xf32>
    %58 = tpu.matmul %55, %57, %cst_51 {dimension_numbers = #tpu.dot_dimension_numbers<[1], [0], [0], [1], [0, 0, 1, 1], [], []>} : vector<32x144xf32>, vector<144x128xf32>, vector<32x128xf32> -> vector<32x128xf32>
    %59 = arith.addf %53, %58 : vector<32x128xf32>
    %c0_52 = arith.constant 0 : index
    %c2_53 = arith.constant 2 : index
    %c0_54 = arith.constant 0 : index
    %60 = vector.load %arg15[%c0_52, %c2_53, %c0_54] : memref<2x18x144xf32, #tpu.memory_space<vmem>>, vector<2x16x144xf32>
    %61 = vector.shape_cast %60 : vector<2x16x144xf32> to vector<32x144xf32>
    %c2_55 = arith.constant 2 : index
    %c0_56 = arith.constant 0 : index
    %c0_57 = arith.constant 0 : index
    %62 = vector.load %arg6[%c2_55, %c0_56, %c0_57] : memref<3x144x128xf32, #tpu.memory_space<vmem>>, vector<1x144x128xf32>
    %63 = vector.shape_cast %62 : vector<1x144x128xf32> to vector<144x128xf32>
    %cst_58 = arith.constant dense<0.000000e+00> : vector<32x128xf32>
    %64 = tpu.matmul %61, %63, %cst_58 {dimension_numbers = #tpu.dot_dimension_numbers<[1], [0], [0], [1], [0, 0, 1, 1], [], []>} : vector<32x144xf32>, vector<144x128xf32>, vector<32x128xf32> -> vector<32x128xf32>
    %65 = arith.addf %59, %64 : vector<32x128xf32>
    %cst_59 = arith.constant dense<0.000000e+00> : vector<128xf32>
    %66 = vector.multi_reduction <add>, %65, %cst_59 [0] : vector<32x128xf32> to vector<128xf32>
    %67 = vector.shape_cast %66 : vector<128xf32> to vector<1x128xf32>
    %c0_60 = arith.constant 0 : index
    %c0_61 = arith.constant 0 : index
    %68 = vector.load %arg7[%c0_60, %c0_61] : memref<128x128xf32, #tpu.memory_space<vmem>>, vector<128x128xf32>
    %cst_62 = arith.constant dense<0.000000e+00> : vector<1x128xf32>
    %69 = tpu.matmul %67, %68, %cst_62 {dimension_numbers = #tpu.dot_dimension_numbers<[1], [0], [0], [1], [0, 0, 1, 1], [], []>} : vector<1x128xf32>, vector<128x128xf32>, vector<1x128xf32> -> vector<1x128xf32>
    %70 = arith.mulf %65, %65 : vector<32x128xf32>
    %cst_63 = arith.constant dense<0.000000e+00> : vector<128xf32>
    %71 = vector.multi_reduction <add>, %70, %cst_63 [0] : vector<32x128xf32> to vector<128xf32>
    %72 = vector.shape_cast %71 : vector<128xf32> to vector<1x128xf32>
    %c0_64 = arith.constant 0 : index
    %c0_65 = arith.constant 0 : index
    %73 = vector.load %arg7[%c0_64, %c0_65] : memref<128x128xf32, #tpu.memory_space<vmem>>, vector<128x128xf32>
    %cst_66 = arith.constant dense<0.000000e+00> : vector<1x128xf32>
    %74 = tpu.matmul %72, %73, %cst_66 {dimension_numbers = #tpu.dot_dimension_numbers<[1], [0], [0], [1], [0, 0, 1, 1], [], []>} : vector<1x128xf32>, vector<128x128xf32>, vector<1x128xf32> -> vector<1x128xf32>
    %75 = arith.mulf %69, %69 : vector<1x128xf32>
    %76 = arith.subf %74, %75 : vector<1x128xf32>
    %cst_67 = arith.constant 9.99999974E-6 : f32
    %77 = vector.broadcast %cst_67 : f32 to vector<1x128xf32>
    %78 = arith.addf %76, %77 : vector<1x128xf32>
    %79 = math.rsqrt %78 : vector<1x128xf32>
    %80 = vector.broadcast %69 : vector<1x128xf32> to vector<32x128xf32>
    %81 = arith.subf %65, %80 : vector<32x128xf32>
    %c0_68 = arith.constant 0 : index
    %c0_69 = arith.constant 0 : index
    %82 = vector.load %arg8[%c0_68, %c0_69] : memref<1x128xf32, #tpu.memory_space<vmem>>, vector<1x128xf32>
    %83 = arith.mulf %79, %82 : vector<1x128xf32>
    %84 = vector.broadcast %83 : vector<1x128xf32> to vector<32x128xf32>
    %85 = arith.mulf %81, %84 : vector<32x128xf32>
    %c0_70 = arith.constant 0 : index
    %c0_71 = arith.constant 0 : index
    %86 = vector.load %arg9[%c0_70, %c0_71] : memref<1x128xf32, #tpu.memory_space<vmem>>, vector<1x128xf32>
    %87 = vector.broadcast %86 : vector<1x128xf32> to vector<32x128xf32>
    %88 = arith.addf %85, %87 : vector<32x128xf32>
    %cst_72 = arith.constant 0.000000e+00 : f32
    %89 = vector.broadcast %cst_72 : f32 to vector<32x128xf32>
    %90 = arith.cmpf ogt, %88, %89 : vector<32x128xf32>
    %cst_73 = arith.constant 2.000000e-01 : f32
    %91 = vector.broadcast %cst_73 : f32 to vector<32x128xf32>
    %92 = arith.mulf %91, %88 : vector<32x128xf32>
    %93 = arith.select %90, %88, %92 : vector<32x128xi1>, vector<32x128xf32>
    %cst_74 = arith.constant 0.000000e+00 : f32
    %94 = vector.broadcast %cst_74 : f32 to vector<2x18x144xf32>
    %c0_75 = arith.constant 0 : index
    %c0_76 = arith.constant 0 : index
    %c0_77 = arith.constant 0 : index
    %95 = vector.load %arg16[%c0_75, %c0_76, %c0_77] : memref<2x18x144xf32, #tpu.memory_space<vmem>>, vector<2x18x144xf32>
    tpu.vector_store %arg16[%c0_75, %c0_76, %c0_77], %94 {strides = array<i32>} : memref<2x18x144xf32, #tpu.memory_space<vmem>>, vector<2x18x144xf32>,
    %96 = vector.shape_cast %93 : vector<32x128xf32> to vector<2x16x128xf32>
    %c0_78 = arith.constant 0 : index
    %c1_79 = arith.constant 1 : index
    %c8_80 = arith.constant 8 : index
    %97 = vector.load %arg16[%c0_78, %c1_79, %c8_80] : memref<2x18x144xf32, #tpu.memory_space<vmem>>, vector<2x16x128xf32>
    tpu.vector_store %arg16[%c0_78, %c1_79, %c8_80], %96 {strides = array<i32>} : memref<2x18x144xf32, #tpu.memory_space<vmem>>, vector<2x16x128xf32>,
    %c0_81 = arith.constant 0 : index
    %c0_82 = arith.constant 0 : index
    %c0_83 = arith.constant 0 : index
    %98 = vector.load %arg16[%c0_81, %c0_82, %c0_83] : memref<2x18x144xf32, #tpu.memory_space<vmem>>, vector<2x16x144xf32>
    %99 = vector.shape_cast %98 : vector<2x16x144xf32> to vector<32x144xf32>
    %c0_84 = arith.constant 0 : index
    %c0_85 = arith.constant 0 : index
    %c0_86 = arith.constant 0 : index
    %100 = vector.load %arg10[%c0_84, %c0_85, %c0_86] : memref<3x144x64xf32, #tpu.memory_space<vmem>>, vector<1x144x64xf32>
    %101 = vector.shape_cast %100 : vector<1x144x64xf32> to vector<144x64xf32>
    %cst_87 = arith.constant dense<0.000000e+00> : vector<32x64xf32>
    %102 = tpu.matmul %99, %101, %cst_87 {dimension_numbers = #tpu.dot_dimension_numbers<[1], [0], [0], [1], [0, 0, 1, 1], [], []>} : vector<32x144xf32>, vector<144x64xf32>, vector<32x64xf32> -> vector<32x64xf32>
    %c0_88 = arith.constant 0 : index
    %c1_89 = arith.constant 1 : index
    %c0_90 = arith.constant 0 : index
    %103 = vector.load %arg16[%c0_88, %c1_89, %c0_90] : memref<2x18x144xf32, #tpu.memory_space<vmem>>, vector<2x16x144xf32>
    %104 = vector.shape_cast %103 : vector<2x16x144xf32> to vector<32x144xf32>
    %c1_91 = arith.constant 1 : index
    %c0_92 = arith.constant 0 : index
    %c0_93 = arith.constant 0 : index
    %105 = vector.load %arg10[%c1_91, %c0_92, %c0_93] : memref<3x144x64xf32, #tpu.memory_space<vmem>>, vector<1x144x64xf32>
    %106 = vector.shape_cast %105 : vector<1x144x64xf32> to vector<144x64xf32>
    %cst_94 = arith.constant dense<0.000000e+00> : vector<32x64xf32>
    %107 = tpu.matmul %104, %106, %cst_94 {dimension_numbers = #tpu.dot_dimension_numbers<[1], [0], [0], [1], [0, 0, 1, 1], [], []>} : vector<32x144xf32>, vector<144x64xf32>, vector<32x64xf32> -> vector<32x64xf32>
    %108 = arith.addf %102, %107 : vector<32x64xf32>
    %c0_95 = arith.constant 0 : index
    %c2_96 = arith.constant 2 : index
    %c0_97 = arith.constant 0 : index
    %109 = vector.load %arg16[%c0_95, %c2_96, %c0_97] : memref<2x18x144xf32, #tpu.memory_space<vmem>>, vector<2x16x144xf32>
    %110 = vector.shape_cast %109 : vector<2x16x144xf32> to vector<32x144xf32>
    %c2_98 = arith.constant 2 : index
    %c0_99 = arith.constant 0 : index
    %c0_100 = arith.constant 0 : index
    %111 = vector.load %arg10[%c2_98, %c0_99, %c0_100] : memref<3x144x64xf32, #tpu.memory_space<vmem>>, vector<1x144x64xf32>
    %112 = vector.shape_cast %111 : vector<1x144x64xf32> to vector<144x64xf32>
    %cst_101 = arith.constant dense<0.000000e+00> : vector<32x64xf32>
    %113 = tpu.matmul %110, %112, %cst_101 {dimension_numbers = #tpu.dot_dimension_numbers<[1], [0], [0], [1], [0, 0, 1, 1], [], []>} : vector<32x144xf32>, vector<144x64xf32>, vector<32x64xf32> -> vector<32x64xf32>
    %114 = arith.addf %108, %113 : vector<32x64xf32>
    %cst_102 = arith.constant dense<0.000000e+00> : vector<64xf32>
    %115 = vector.multi_reduction <add>, %114, %cst_102 [0] : vector<32x64xf32> to vector<64xf32>
    %116 = vector.shape_cast %115 : vector<64xf32> to vector<1x64xf32>
    %c0_103 = arith.constant 0 : index
    %c0_104 = arith.constant 0 : index
    %117 = vector.load %arg11[%c0_103, %c0_104] : memref<64x64xf32, #tpu.memory_space<vmem>>, vector<64x64xf32>
    %cst_105 = arith.constant dense<0.000000e+00> : vector<1x64xf32>
    %118 = tpu.matmul %116, %117, %cst_105 {dimension_numbers = #tpu.dot_dimension_numbers<[1], [0], [0], [1], [0, 0, 1, 1], [], []>} : vector<1x64xf32>, vector<64x64xf32>, vector<1x64xf32> -> vector<1x64xf32>
    %119 = arith.mulf %114, %114 : vector<32x64xf32>
    %cst_106 = arith.constant dense<0.000000e+00> : vector<64xf32>
    %120 = vector.multi_reduction <add>, %119, %cst_106 [0] : vector<32x64xf32> to vector<64xf32>
    %121 = vector.shape_cast %120 : vector<64xf32> to vector<1x64xf32>
    %c0_107 = arith.constant 0 : index
    %c0_108 = arith.constant 0 : index
    %122 = vector.load %arg11[%c0_107, %c0_108] : memref<64x64xf32, #tpu.memory_space<vmem>>, vector<64x64xf32>
    %cst_109 = arith.constant dense<0.000000e+00> : vector<1x64xf32>
    %123 = tpu.matmul %121, %122, %cst_109 {dimension_numbers = #tpu.dot_dimension_numbers<[1], [0], [0], [1], [0, 0, 1, 1], [], []>} : vector<1x64xf32>, vector<64x64xf32>, vector<1x64xf32> -> vector<1x64xf32>
    %124 = arith.mulf %118, %118 : vector<1x64xf32>
    %125 = arith.subf %123, %124 : vector<1x64xf32>
    %cst_110 = arith.constant 9.99999974E-6 : f32
    %126 = vector.broadcast %cst_110 : f32 to vector<1x64xf32>
    %127 = arith.addf %125, %126 : vector<1x64xf32>
    %128 = math.rsqrt %127 : vector<1x64xf32>
    %129 = vector.broadcast %118 : vector<1x64xf32> to vector<32x64xf32>
    %130 = arith.subf %114, %129 : vector<32x64xf32>
    %c0_111 = arith.constant 0 : index
    %c0_112 = arith.constant 0 : index
    %131 = vector.load %arg12[%c0_111, %c0_112] : memref<1x64xf32, #tpu.memory_space<vmem>>, vector<1x64xf32>
    %132 = arith.mulf %128, %131 : vector<1x64xf32>
    %133 = vector.broadcast %132 : vector<1x64xf32> to vector<32x64xf32>
    %134 = arith.mulf %130, %133 : vector<32x64xf32>
    %c0_113 = arith.constant 0 : index
    %c0_114 = arith.constant 0 : index
    %135 = vector.load %arg13[%c0_113, %c0_114] : memref<1x64xf32, #tpu.memory_space<vmem>>, vector<1x64xf32>
    %136 = vector.broadcast %135 : vector<1x64xf32> to vector<32x64xf32>
    %137 = arith.addf %134, %136 : vector<32x64xf32>
    %c0_115 = arith.constant 0 : index
    %c0_116 = arith.constant 0 : index
    %138 = vector.load %arg1[%c0_115, %c0_116] : memref<32x64xf32, #tpu.memory_space<vmem>>, vector<32x64xf32>
    %139 = arith.addf %137, %138 : vector<32x64xf32>
    %c0_117 = arith.constant 0 : index
    %c0_118 = arith.constant 0 : index
    %140 = vector.load %arg14[%c0_117, %c0_118] : memref<32x64xf32, #tpu.memory_space<vmem>>, vector<32x64xf32>
    tpu.vector_store %arg14[%c0_117, %c0_118], %139 {strides = array<i32>} : memref<32x64xf32, #tpu.memory_space<vmem>>, vector<32x64xf32>,
    return
  }
}

</mosaic_0001>

<llo_original>
// kernel: residual_block_2d.1
$region0: #{residual_block_2d.1}
  #allocation0 [shape = 'u32[]', space=smem, size = 0x4, offset = 0x4, fixed_abs, tag = 'smem constant byte address 0x4 - core index']
  #allocation1 [shape = 'u32[72,128]{1,0:T(1,128)}', space=vmem, size = 0x9000, scoped, tag = 'internal scratch']
  #allocation2 [shape = 'f32[2,18,144]{2,1,0:T(8,128)}', space=vmem, size = 0xc000, scoped, tag = 'scratch operand']
  #allocation3 [shape = 'f32[2,18,144]{2,1,0:T(8,128)}', space=vmem, size = 0xc000, scoped, tag = 'scratch operand']
  %s0 = inlined_call_operand.vmem [shape: f32[2,18,72], index: 0, kind: input, shape index: {}]
  %s1 = inlined_call_operand.vmem [shape: f32[32,64], index: 1, kind: input, shape index: {}]
  %s2 = inlined_call_operand.vmem [shape: f32[3,72,128], index: 2, kind: input, shape index: {}]
  %s3 = inlined_call_operand.vmem [shape: f32[128,128], index: 3, kind: input, shape index: {}, may-alias: {3,7}]
  %s4 = inlined_call_operand.vmem [shape: f32[1,128], index: 4, kind: input, shape index: {}]
  %s5 = inlined_call_operand.vmem [shape: f32[1,128], index: 5, kind: input, shape index: {}]
  %s6 = inlined_call_operand.vmem [shape: f32[3,144,128], index: 6, kind: input, shape index: {}]
  %s7 = inlined_call_operand.vmem [shape: f32[128,128], index: 7, kind: input, shape index: {}, may-alias: {3,7}]
  %s8 = inlined_call_operand.vmem [shape: f32[1,128], index: 8, kind: input, shape index: {}]
  %s9 = inlined_call_operand.vmem [shape: f32[1,128], index: 9, kind: input, shape index: {}]
  %s10 = inlined_call_operand.vmem [shape: f32[3,144,64], index: 10, kind: input, shape index: {}]
  %s11 = inlined_call_operand.vmem [shape: f32[64,64], index: 11, kind: input, shape index: {}]
  %s12 = inlined_call_operand.vmem [shape: f32[1,64], index: 12, kind: input, shape index: {}]
  %s13 = inlined_call_operand.vmem [shape: f32[1,64], index: 13, kind: input, shape index: {}]
  %s14 = inlined_call_operand.vmem [shape: f32[32,64], index: 14, kind: output, shape index: {}]
  %s15 = sld [smem:[#allocation0]]
  $region66: #{residual_block_2d.1} parent=0
    _
  %s17 = ssub.s32 1, %s15
  %s18 = scalar_select 0, %s17, %s15
  // Predicated region
  $region2: #{residual_block_2d.1} parent=0 // pred_check
    _
  $region3: #{residual_block_2d.1} parent=0 // pred_check_branch
    %20 = sbr.rel (0) target = $region5
  $region4: #{residual_block_2d.1} parent=0 // pred_region
    _
  $region5: #{residual_block_2d.1} parent=0 // pred_fallthru
    _
  // Predicated region
  $region6: #{residual_block_2d.1} parent=0 // pred_check
    _
  $region7: #{residual_block_2d.1} parent=0 // pred_check_branch
    %22 = sbr.rel (0) target = $region9
  $region8: #{residual_block_2d.1} parent=0 // pred_region
    _
  $region9: #{residual_block_2d.1} parent=0 // pred_fallthru
    _
  // Predicated region
  $region10: #{residual_block_2d.1} parent=0 // pred_check
    _
  $region11: #{residual_block_2d.1} parent=0 // pred_check_branch
    %24 = sbr.rel (0) target = $region13
  $region12: #{residual_block_2d.1} parent=0 // pred_region
    _
  $region13: #{residual_block_2d.1} parent=0 // pred_fallthru
    _
  // Predicated region
  $region14: #{residual_block_2d.1} parent=0 // pred_check
    _
  $region15: #{residual_block_2d.1} parent=0 // pred_check_branch
    %26 = sbr.rel (0) target = $region17
  $region16: #{residual_block_2d.1} parent=0 // pred_region
    _
  $region17: #{residual_block_2d.1} parent=0 // pred_fallthru
    _
  // Predicated region
  $region18: #{residual_block_2d.1} parent=0 // pred_check
    _
  $region19: #{residual_block_2d.1} parent=0 // pred_check_branch
    %28 = sbr.rel (0) target = $region21
  $region20: #{residual_block_2d.1} parent=0 // pred_region
    _
  $region21: #{residual_block_2d.1} parent=0 // pred_fallthru
    _
  // Predicated region
  $region22: #{residual_block_2d.1} parent=0 // pred_check
    _
  $region23: #{residual_block_2d.1} parent=0 // pred_check_branch
    %30 = sbr.rel (0) target = $region25
  $region24: #{residual_block_2d.1} parent=0 // pred_region
    _
  $region25: #{residual_block_2d.1} parent=0 // pred_fallthru
    _
  // Predicated region
  $region26: #{residual_block_2d.1} parent=0 // pred_check
    _
  $region27: #{residual_block_2d.1} parent=0 // pred_check_branch
    %32 = sbr.rel (0) target = $region29
  $region28: #{residual_block_2d.1} parent=0 // pred_region
    _
  $region29: #{residual_block_2d.1} parent=0 // pred_fallthru
    _
  // Predicated region
  $region30: #{residual_block_2d.1} parent=0 // pred_check
    _
  $region31: #{residual_block_2d.1} parent=0 // pred_check_branch
    %34 = sbr.rel (0) target = $region33
  $region32: #{residual_block_2d.1} parent=0 // pred_region
    _
  $region33: #{residual_block_2d.1} parent=0 // pred_fallthru
    _
  // Predicated region
  $region34: #{residual_block_2d.1} parent=0 // pred_check
    _
  $region35: #{residual_block_2d.1} parent=0 // pred_check_branch
    %36 = sbr.rel (0) target = $region37
  $region36: #{residual_block_2d.1} parent=0 // pred_region
    _
  $region37: #{residual_block_2d.1} parent=0 // pred_fallthru
    _
  // Predicated region
  $region38: #{residual_block_2d.1} parent=0 // pred_check
    _
  $region39: #{residual_block_2d.1} parent=0 // pred_check_branch
    %38 = sbr.rel (0) target = $region41
  $region40: #{residual_block_2d.1} parent=0 // pred_region
    _
  $region41: #{residual_block_2d.1} parent=0 // pred_fallthru
    _
  // Predicated region
  $region42: #{residual_block_2d.1} parent=0 // pred_check
    _
  $region43: #{residual_block_2d.1} parent=0 // pred_check_branch
    %40 = sbr.rel (0) target = $region45
  $region44: #{residual_block_2d.1} parent=0 // pred_region
    _
  $region45: #{residual_block_2d.1} parent=0 // pred_fallthru
    _
  // Predicated region
  $region46: #{residual_block_2d.1} parent=0 // pred_check
    _
  $region47: #{residual_block_2d.1} parent=0 // pred_check_branch
    %42 = sbr.rel (0) target = $region49
  $region48: #{residual_block_2d.1} parent=0 // pred_region
    _
  $region49: #{residual_block_2d.1} parent=0 // pred_fallthru
    _
  // Predicated region
  $region50: #{residual_block_2d.1} parent=0 // pred_check
    _
  $region51: #{residual_block_2d.1} parent=0 // pred_check_branch
    %44 = sbr.rel (0) target = $region53
  $region52: #{residual_block_2d.1} parent=0 // pred_region
    _
  $region53: #{residual_block_2d.1} parent=0 // pred_fallthru
    _
  // Predicated region
  $region54: #{residual_block_2d.1} parent=0 // pred_check
    _
  $region55: #{residual_block_2d.1} parent=0 // pred_check_branch
    %46 = sbr.rel (0) target = $region57
  $region56: #{residual_block_2d.1} parent=0 // pred_region
    _
  $region57: #{residual_block_2d.1} parent=0 // pred_fallthru
    _
  %v47 = vld [vmem:[%s0] sm:$0xff]
  %v48 = vld [vmem:[%s0 + $0x8] sm:$0xff]
  %v49 = vld [vmem:[%s0 + $0x18] sm:$0xff]
  %v50 = vld [vmem:[%s0 + $0x20] sm:$0xff]
  %v51 = vld [vmem:[%s2] sm:$0xff]
  %v52 = vld [vmem:[%s2 + $0x8] sm:$0xff]
  %v53 = vld [vmem:[%s2 + $0x10] sm:$0xff]
  %v54 = vld [vmem:[%s2 + $0x18] sm:$0xff]
  %v55 = vld [vmem:[%s2 + $0x20] sm:$0xff]
  %v56 = vld [vmem:[%s2 + $0x28] sm:$0xff]
  %v57 = vld [vmem:[%s2 + $0x30] sm:$0xff]
  %v58 = vld [vmem:[%s2 + $0x38] sm:$0xff]
  %v59 = vld [vmem:[%s2 + $0x40] sm:$0xff]
  %v60 = vld [vmem:[%s0 + $0x1] sm:$0xff]
  %v61 = vld [vmem:[%s0 + $0x9] sm:$0xff]
  %v62 = vld [vmem:[%s0 + $0x19] sm:$0xff]
  %v63 = vld [vmem:[%s0 + $0x21] sm:$0xff]
  %s64 = scalar_lea.vmem %s2, 72
  %v65 = vld [vmem:[%s64] sm:$0xff]
  %v66 = vld [vmem:[%s64 + $0x8] sm:$0xff]
  %v67 = vld [vmem:[%s64 + $0x10] sm:$0xff]
  %v68 = vld [vmem:[%s64 + $0x18] sm:$0xff]
  %v69 = vld [vmem:[%s64 + $0x20] sm:$0xff]
  %v70 = vld [vmem:[%s64 + $0x28] sm:$0xff]
  %v71 = vld [vmem:[%s64 + $0x30] sm:$0xff]
  %v72 = vld [vmem:[%s64 + $0x38] sm:$0xff]
  %v73 = vld [vmem:[%s64 + $0x40] sm:$0xff]
  %vm74 = vcmask 588800
  %v76 = vsel %vm74, %v60, 0
  %v79 = vsel %vm74, %v61, 0
  %v82 = vsel %vm74, %v62, 0
  %v85 = vsel %vm74, %v63, 0
  %87 = vmatpush.msra.mxu0 0.0
  %88 = vmatpush.msra.mxu0 0.0
  %89 = vmatpush.msra.mxu0 0.0
  %90 = vmatpush.msra.mxu0 0.0
  %91 = vmatpush.msra.mxu0 0.0
  %92 = vmatpush.msra.mxu0 0.0
  %93 = vmatpush.msra.mxu0 0.0
  %94 = vmatpush.msra.mxu0 %v73
  %95 = vmatpush.msra.mxu0 %v72
  %96 = vmatpush.msra.mxu0 %v71
  %97 = vmatpush.msra.mxu0 %v70
  %98 = vmatpush.msra.mxu0 %v69
  %99 = vmatpush.msra.mxu0 %v68
  %100 = vmatpush.msra.mxu0 %v67
  %101 = vmatpush.msra.mxu0 %v66
  %102 = vmatpush.msra.mxu0 %v65
  %103 = vmatmul.f32.gmra.mxu0 %v76
  %v104 = vpop.f32.mrf.mxu0
  %v105 = vadd.f32 0.0, %v104
  %106 = vmatmul.f32.gmra.mxu0 %v79
  %v107 = vpop.f32.mrf.mxu0
  %v108 = vadd.f32 0.0, %v107
  %109 = vmatmul.f32.gmra.mxu0 %v82
  %v110 = vpop.f32.mrf.mxu0
  %v111 = vadd.f32 0.0, %v110
  %112 = vmatmul.f32.gmra.mxu0 %v85
  %v113 = vpop.f32.mrf.mxu0
  %v114 = vadd.f32 0.0, %v113
  %115 = vdwg.mxu0
  %v117 = vsel %vm74, %v47, 0
  %v120 = vsel %vm74, %v48, 0
  %v123 = vsel %vm74, %v49, 0
  %v126 = vsel %vm74, %v50, 0
  %128 = vmatpush.msra.mxu0 0.0
  %129 = vmatpush.msra.mxu0 0.0
  %130 = vmatpush.msra.mxu0 0.0
  %131 = vmatpush.msra.mxu0 0.0
  %132 = vmatpush.msra.mxu0 0.0
  %133 = vmatpush.msra.mxu0 0.0
  %134 = vmatpush.msra.mxu0 0.0
  %135 = vmatpush.msra.mxu0 %v59
  %136 = vmatpush.msra.mxu0 %v58
  %137 = vmatpush.msra.mxu0 %v57
  %138 = vmatpush.msra.mxu0 %v56
  %139 = vmatpush.msra.mxu0 %v55
  %140 = vmatpush.msra.mxu0 %v54
  %141 = vmatpush.msra.mxu0 %v53
  %142 = vmatpush.msra.mxu0 %v52
  %143 = vmatpush.msra.mxu0 %v51
  %144 = vmatmul.f32.gmra.mxu0 %v117
  %v145 = vpop.f32.mrf.mxu0
  %v146 = vadd.f32 %v105, %v145
  %147 = vmatmul.f32.gmra.mxu0 %v120
  %v148 = vpop.f32.mrf.mxu0
  %v149 = vadd.f32 %v108, %v148
  %150 = vmatmul.f32.gmra.mxu0 %v123
  %v151 = vpop.f32.mrf.mxu0
  %v152 = vadd.f32 %v111, %v151
  %153 = vmatmul.f32.gmra.mxu0 %v126
  %v154 = vpop.f32.mrf.mxu0
  %v155 = vadd.f32 %v114, %v154
  %156 = vdwg.mxu0
  %v157 = vld [vmem:[%s0 + $0x2] sm:$0xff]
  %v158 = vld [vmem:[%s0 + $0xa] sm:$0xff]
  %v159 = vld [vmem:[%s0 + $0x1a] sm:$0xff]
  %v160 = vld [vmem:[%s0 + $0x22] sm:$0xff]
  %s161 = scalar_lea.vmem %s2, 144
  %v162 = vld [vmem:[%s161] sm:$0xff]
  %v163 = vld [vmem:[%s161 + $0x8] sm:$0xff]
  %v164 = vld [vmem:[%s161 + $0x10] sm:$0xff]
  %v165 = vld [vmem:[%s161 + $0x18] sm:$0xff]
  %v166 = vld [vmem:[%s161 + $0x20] sm:$0xff]
  %v167 = vld [vmem:[%s161 + $0x28] sm:$0xff]
  %v168 = vld [vmem:[%s161 + $0x30] sm:$0xff]
  %v169 = vld [vmem:[%s161 + $0x38] sm:$0xff]
  %v170 = vld [vmem:[%s161 + $0x40] sm:$0xff]
  %v172 = vsel %vm74, %v157, 0
  %v175 = vsel %vm74, %v158, 0
  %v178 = vsel %vm74, %v159, 0
  %v181 = vsel %vm74, %v160, 0
  %183 = vmatpush.msra.mxu0 0.0
  %184 = vmatpush.msra.mxu0 0.0
  %185 = vmatpush.msra.mxu0 0.0
  %186 = vmatpush.msra.mxu0 0.0
  %187 = vmatpush.msra.mxu0 0.0
  %188 = vmatpush.msra.mxu0 0.0
  %189 = vmatpush.msra.mxu0 0.0
  %190 = vmatpush.msra.mxu0 %v170
  %191 = vmatpush.msra.mxu0 %v169
  %192 = vmatpush.msra.mxu0 %v168
  %193 = vmatpush.msra.mxu0 %v167
  %194 = vmatpush.msra.mxu0 %v166
  %195 = vmatpush.msra.mxu0 %v165
  %196 = vmatpush.msra.mxu0 %v164
  %197 = vmatpush.msra.mxu0 %v163
  %198 = vmatpush.msra.mxu0 %v162
  %199 = vmatmul.f32.gmra.mxu0 %v172
  %v200 = vpop.f32.mrf.mxu0
  %v201 = vadd.f32 0.0, %v200
  %202 = vmatmul.f32.gmra.mxu0 %v175
  %v203 = vpop.f32.mrf.mxu0
  %v204 = vadd.f32 0.0, %v203
  %205 = vmatmul.f32.gmra.mxu0 %v178
  %v206 = vpop.f32.mrf.mxu0
  %v207 = vadd.f32 0.0, %v206
  %208 = vmatmul.f32.gmra.mxu0 %v181
  %v209 = vpop.f32.mrf.mxu0
  %v210 = vadd.f32 0.0, %v209
  %211 = vdwg.mxu0
  %v212 = vadd.f32 %v146, %v201
  %v213 = vadd.f32 %v149, %v204
  %v214 = vadd.f32 %v152, %v207
  %v215 = vadd.f32 %v155, %v210
  %v216 = vadd.f32 %v212, %v213
  %v217 = vadd.f32 %v216, %v214
  %v218 = vadd.f32 %v217, %v215
  %v219 = vrot.slane %v218, 4
  %v220 = vadd.f32 %v218, %v219
  %v221 = vrot.slane %v220, 2
  %v222 = vadd.f32 %v220, %v221
  %v223 = vrot.slane %v222, 1
  %v224 = vadd.f32 %v222, %v223
  %v225 = vld [vmem:[%s3] sm:$0xff]
  %v226 = vld [vmem:[%s3 + $0x8] sm:$0xff]
  %v227 = vld [vmem:[%s3 + $0x10] sm:$0xff]
  %v228 = vld [vmem:[%s3 + $0x18] sm:$0xff]
  %v229 = vld [vmem:[%s3 + $0x20] sm:$0xff]
  %v230 = vld [vmem:[%s3 + $0x28] sm:$0xff]
  %v231 = vld [vmem:[%s3 + $0x30] sm:$0xff]
  %v232 = vld [vmem:[%s3 + $0x38] sm:$0xff]
  %v233 = vld [vmem:[%s3 + $0x40] sm:$0xff]
  %v234 = vld [vmem:[%s3 + $0x48] sm:$0xff]
  %v235 = vld [vmem:[%s3 + $0x50] sm:$0xff]
  %v236 = vld [vmem:[%s3 + $0x58] sm:$0xff]
  %v237 = vld [vmem:[%s3 + $0x60] sm:$0xff]
  %v238 = vld [vmem:[%s3 + $0x68] sm:$0xff]
  %v239 = vld [vmem:[%s3 + $0x70] sm:$0xff]
  %v240 = vld [vmem:[%s3 + $0x78] sm:$0xff]
  %241 = vmatpush.msra.mxu0 %v240
  %242 = vmatpush.msra.mxu0 %v239
  %243 = vmatpush.msra.mxu0 %v238
  %244 = vmatpush.msra.mxu0 %v237
  %245 = vmatpush.msra.mxu0 %v236
  %246 = vmatpush.msra.mxu0 %v235
  %247 = vmatpush.msra.mxu0 %v234
  %248 = vmatpush.msra.mxu0 %v233
  %249 = vmatpush.msra.mxu0 %v232
  %250 = vmatpush.msra.mxu0 %v231
  %251 = vmatpush.msra.mxu0 %v230
  %252 = vmatpush.msra.mxu0 %v229
  %253 = vmatpush.msra.mxu0 %v228
  %254 = vmatpush.msra.mxu0 %v227
  %255 = vmatpush.msra.mxu0 %v226
  %256 = vmatpush.msra.mxu0 %v225
  %257 = vmatmul.f32.gmra.mxu0 %v224
  %v258 = vpop.f32.mrf.mxu0
  %v259 = vadd.f32 0.0, %v258
  %260 = vdwg.mxu0
  %v261 = vmul.f32 %v212, %v212
  %v262 = vmul.f32 %v213, %v213
  %v263 = vmul.f32 %v214, %v214
  %v264 = vmul.f32 %v215, %v215
  %v265 = vadd.f32 %v261, %v262
  %v266 = vadd.f32 %v265, %v263
  %v267 = vadd.f32 %v266, %v264
  %v268 = vrot.slane %v267, 4
  %v269 = vadd.f32 %v267, %v268
  %v270 = vrot.slane %v269, 2
  %v271 = vadd.f32 %v269, %v270
  %v272 = vrot.slane %v271, 1
  %v273 = vadd.f32 %v271, %v272
  %274 = vmatpush.msra.mxu0 %v240
  %275 = vmatpush.msra.mxu0 %v239
  %276 = vmatpush.msra.mxu0 %v238
  %277 = vmatpush.msra.mxu0 %v237
  %278 = vmatpush.msra.mxu0 %v236
  %279 = vmatpush.msra.mxu0 %v235
  %280 = vmatpush.msra.mxu0 %v234
  %281 = vmatpush.msra.mxu0 %v233
  %282 = vmatpush.msra.mxu0 %v232
  %283 = vmatpush.msra.mxu0 %v231
  %284 = vmatpush.msra.mxu0 %v230
  %285 = vmatpush.msra.mxu0 %v229
  %286 = vmatpush.msra.mxu0 %v228
  %287 = vmatpush.msra.mxu0 %v227
  %288 = vmatpush.msra.mxu0 %v226
  %289 = vmatpush.msra.mxu0 %v225
  %290 = vmatmul.f32.gmra.mxu0 %v273
  %v291 = vpop.f32.mrf.mxu0
  %v292 = vadd.f32 0.0, %v291
  %293 = vdwg.mxu0
  %v294 = vmul.f32 %v259, %v259
  %v295 = vsub.f32 %v292, %v294
  %v296 = vadd.f32 %v295, 1e-05
  %v297 = vrsqrt.pop %v296
  %v298 = vmul.f32 %v297, %v296
  %v299 = vmul.f32 %v298, %v297
  %v300 = vmul.f32 0.5, %v299
  %v301 = vsub.f32 1.5, %v300
  %v302 = vmul.f32 %v297, %v301
  %vm303 = vweird.f32 %v296
  %vm304 = vweird.f32 %v297
  %vm305 = vmor %vm303, %vm304
  %v306 = vsel %vm305, %v297, %v302
  %v307 = vperm.slane %v259, 0
  %v308 = vsub.f32 %v212, %v307
  %v309 = vsub.f32 %v213, %v307
  %v310 = vsub.f32 %v214, %v307
  %v311 = vsub.f32 %v215, %v307
  %v312 = vld [vmem:[%s4] sm:$0x1]
  %v313 = vmul.f32 %v306, %v312
  %v314 = vperm.slane %v313, 0
  %v315 = vmul.f32 %v308, %v314
  %v316 = vmul.f32 %v309, %v314
  %v317 = vmul.f32 %v310, %v314
  %v318 = vmul.f32 %v311, %v314
  %v319 = vld [vmem:[%s5] sm:$0x1]
  %v321 = vperm.slane %v319, 0
  %v323 = vadd.f32 %v315, %v321
  %v324 = vadd.f32 %v316, %v321
  %v325 = vadd.f32 %v317, %v321
  %v326 = vadd.f32 %v318, %v321
  %vm327 = vcmp.gt.f32.partialorder %v323, 0.0
  %vm328 = vcmp.gt.f32.partialorder %v324, 0.0
  %vm329 = vcmp.gt.f32.partialorder %v325, 0.0
  %vm330 = vcmp.gt.f32.partialorder %v326, 0.0
  %v331 = vmul.f32 %v323, 0.2
  %v332 = vmul.f32 %v324, 0.2
  %v333 = vmul.f32 %v325, 0.2
  %v334 = vmul.f32 %v326, 0.2
  %v335 = vsel %vm327, %v323, %v331
  %v336 = vsel %vm328, %v324, %v332
  %v337 = vsel %vm329, %v325, %v333
  %v338 = vsel %vm330, %v326, %v334
  %339 = vst [vmem:[#allocation2] sm:$0xff] 0.0
  %vm340 = vcmask 130048
  %341 = vst.msk [vmem:[#allocation2 + $0x8] sm:$0xff] %vm340, 0.0
  %342 = vst [vmem:[#allocation2 + $0x10] sm:$0xff] 0.0
  %343 = vst.msk [vmem:[#allocation2 + $0x18] sm:$0xff] %vm340, 0.0
  %344 = vst [vmem:[#allocation2 + $0x20] sm:$0x3] 0.0
  %vm345 = vcmask 123904
  %346 = vst.msk [vmem:[#allocation2 + $0x28] sm:$0x3] %vm345, 0.0
  %347 = vst [vmem:[#allocation2 + $0x30] sm:$0xff] 0.0
  %348 = vst.msk [vmem:[#allocation2 + $0x38] sm:$0xff] %vm340, 0.0
  %349 = vst [vmem:[#allocation2 + $0x40] sm:$0xff] 0.0
  %350 = vst.msk [vmem:[#allocation2 + $0x48] sm:$0xff] %vm340, 0.0
  %351 = vst [vmem:[#allocation2 + $0x50] sm:$0x3] 0.0
  %352 = vst.msk [vmem:[#allocation2 + $0x58] sm:$0x3] %vm345, 0.0
  %vm357 = vcmask 1040384
  %v358 = vrot.slane %v335, 7
  %v359 = vrot.slane %v336, 7
  %v360 = vsel %vm357, %v358, %v359
  %v361 = vrot.slane %v337, 7
  %v362 = vrot.slane %v338, 7
  %v363 = vsel %vm357, %v361, %v362
  %364 = vrot.lane.b32.xlu0 %v358, 8
  %v365 = vpop.permute.xlu0 %364
  %366 = vrot.lane.b32.xlu0 %v360, 8
  %v367 = vpop.permute.xlu0 %366
  %368 = vrot.lane.b32.xlu0 %v359, 8
  %v369 = vpop.permute.xlu0 %368
  %370 = vrot.lane.b32.xlu0 %v361, 8
  %v371 = vpop.permute.xlu0 %370
  %372 = vrot.lane.b32.xlu0 %v363, 8
  %v373 = vpop.permute.xlu0 %372
  %374 = vrot.lane.b32.xlu0 %v362, 8
  %v375 = vpop.permute.xlu0 %374
  %vm382 = vcmask 1047617
  %383 = vst.msk [vmem:[#allocation2] sm:$0xfe] %vm382, %v365
  %vm384 = vcmask 64513
  %385 = vst.msk [vmem:[#allocation2 + $0x8] sm:$0xfe] %vm384, %v365
  %vm386 = vcmask 1047616
  %387 = vst.msk [vmem:[#allocation2 + $0x10] sm:$0xff] %vm386, %v367
  %vm388 = vcmask 64512
  %389 = vst.msk [vmem:[#allocation2 + $0x18] sm:$0xff] %vm388, %v367
  %vm390 = vcmask 1040448
  %391 = vst.msk [vmem:[#allocation2 + $0x20] sm:$0x1] %vm390, %v369
  %vm392 = vcmask 57344
  %393 = vst.msk [vmem:[#allocation2 + $0x28] sm:$0x1] %vm392, %v369
  %394 = vst.msk [vmem:[#allocation2 + $0x30] sm:$0xfe] %vm382, %v371
  %395 = vst.msk [vmem:[#allocation2 + $0x38] sm:$0xfe] %vm384, %v371
  %396 = vst.msk [vmem:[#allocation2 + $0x40] sm:$0xff] %vm386, %v373
  %397 = vst.msk [vmem:[#allocation2 + $0x48] sm:$0xff] %vm388, %v373
  %398 = vst.msk [vmem:[#allocation2 + $0x50] sm:$0x1] %vm390, %v375
  %399 = vst.msk [vmem:[#allocation2 + $0x58] sm:$0x1] %vm392, %v375
  %v400 = vld [vmem:[#allocation2] sm:$0xff]
  %v401 = vld [vmem:[#allocation2 + $0x8] sm:$0xff]
  %v402 = vld [vmem:[#allocation2 + $0x10] sm:$0xff]
  %v403 = vld [vmem:[#allocation2 + $0x18] sm:$0xff]
  %v404 = vld [vmem:[#allocation2 + $0x30] sm:$0xff]
  %v405 = vld [vmem:[#allocation2 + $0x38] sm:$0xff]
  %v406 = vld [vmem:[#allocation2 + $0x40] sm:$0xff]
  %v407 = vld [vmem:[#allocation2 + $0x48] sm:$0xff]
  %v408 = vld [vmem:[%s6] sm:$0xff]
  %v409 = vld [vmem:[%s6 + $0x8] sm:$0xff]
  %v410 = vld [vmem:[%s6 + $0x10] sm:$0xff]
  %v411 = vld [vmem:[%s6 + $0x18] sm:$0xff]
  %v412 = vld [vmem:[%s6 + $0x20] sm:$0xff]
  %v413 = vld [vmem:[%s6 + $0x28] sm:$0xff]
  %v414 = vld [vmem:[%s6 + $0x30] sm:$0xff]
  %v415 = vld [vmem:[%s6 + $0x38] sm:$0xff]
  %v416 = vld [vmem:[%s6 + $0x40] sm:$0xff]
  %v417 = vld [vmem:[%s6 + $0x48] sm:$0xff]
  %v418 = vld [vmem:[%s6 + $0x50] sm:$0xff]
  %v419 = vld [vmem:[%s6 + $0x58] sm:$0xff]
  %v420 = vld [vmem:[%s6 + $0x60] sm:$0xff]
  %v421 = vld [vmem:[%s6 + $0x68] sm:$0xff]
  %v422 = vld [vmem:[%s6 + $0x70] sm:$0xff]
  %v423 = vld [vmem:[%s6 + $0x78] sm:$0xff]
  %v424 = vld [vmem:[%s6 + $0x80] sm:$0xff]
  %v425 = vld [vmem:[%s6 + $0x88] sm:$0xff]
  %v426 = vld [vmem:[#allocation2] sm:$0xfe]
  %v427 = vld [vmem:[#allocation2 + $0x8] sm:$0xfe]
  %v428 = vld [vmem:[#allocation2 + $0x20] sm:$0x1]
  %v429 = vld [vmem:[#allocation2 + $0x28] sm:$0x1]
  %v430 = vld [vmem:[#allocation2 + $0x30] sm:$0xfe]
  %v431 = vld [vmem:[#allocation2 + $0x38] sm:$0xfe]
  %v432 = vld [vmem:[#allocation2 + $0x50] sm:$0x1]
  %v433 = vld [vmem:[#allocation2 + $0x58] sm:$0x1]
  %vm446 = vcmask 1046528
  %v447 = vrot.slane %v426, 1
  %v448 = vrot.slane %v402, 1
  %v449 = vsel %vm446, %v447, %v448
  %v450 = vrot.slane %v427, 1
  %v451 = vrot.slane %v403, 1
  %v452 = vsel %vm446, %v450, %v451
  %v453 = vrot.slane %v428, 1
  %v454 = vsel %vm446, %v448, %v453
  %v455 = vrot.slane %v429, 1
  %v456 = vsel %vm446, %v451, %v455
  %v457 = vrot.slane %v430, 1
  %v458 = vrot.slane %v406, 1
  %v459 = vsel %vm446, %v457, %v458
  %v460 = vrot.slane %v431, 1
  %v461 = vrot.slane %v407, 1
  %v462 = vsel %vm446, %v460, %v461
  %v463 = vrot.slane %v432, 1
  %v464 = vsel %vm446, %v458, %v463
  %v465 = vrot.slane %v433, 1
  %v466 = vsel %vm446, %v461, %v465
  %s471 = scalar_lea.vmem %s6, 144
  %v472 = vld [vmem:[%s471] sm:$0xff]
  %v473 = vld [vmem:[%s471 + $0x8] sm:$0xff]
  %v474 = vld [vmem:[%s471 + $0x10] sm:$0xff]
  %v475 = vld [vmem:[%s471 + $0x18] sm:$0xff]
  %v476 = vld [vmem:[%s471 + $0x20] sm:$0xff]
  %v477 = vld [vmem:[%s471 + $0x28] sm:$0xff]
  %v478 = vld [vmem:[%s471 + $0x30] sm:$0xff]
  %v479 = vld [vmem:[%s471 + $0x38] sm:$0xff]
  %v480 = vld [vmem:[%s471 + $0x40] sm:$0xff]
  %v481 = vld [vmem:[%s471 + $0x48] sm:$0xff]
  %v482 = vld [vmem:[%s471 + $0x50] sm:$0xff]
  %v483 = vld [vmem:[%s471 + $0x58] sm:$0xff]
  %v484 = vld [vmem:[%s471 + $0x60] sm:$0xff]
  %v485 = vld [vmem:[%s471 + $0x68] sm:$0xff]
  %v486 = vld [vmem:[%s471 + $0x70] sm:$0xff]
  %v487 = vld [vmem:[%s471 + $0x78] sm:$0xff]
  %v488 = vld [vmem:[%s471 + $0x80] sm:$0xff]
  %v489 = vld [vmem:[%s471 + $0x88] sm:$0xff]
  %v490 = vsel %vm340, %v452, 0
  %v492 = vsel %vm340, %v456, 0
  %v494 = vsel %vm340, %v462, 0
  %v496 = vsel %vm340, %v466, 0
  %498 = vmatpush.msra.mxu0 %v487
  %499 = vmatpush.msra.mxu0 %v486
  %500 = vmatpush.msra.mxu0 %v485
  %501 = vmatpush.msra.mxu0 %v484
  %502 = vmatpush.msra.mxu0 %v483
  %503 = vmatpush.msra.mxu0 %v482
  %504 = vmatpush.msra.mxu0 %v481
  %505 = vmatpush.msra.mxu0 %v480
  %506 = vmatpush.msra.mxu0 %v479
  %507 = vmatpush.msra.mxu0 %v478
  %508 = vmatpush.msra.mxu0 %v477
  %509 = vmatpush.msra.mxu0 %v476
  %510 = vmatpush.msra.mxu0 %v475
  %511 = vmatpush.msra.mxu0 %v474
  %512 = vmatpush.msra.mxu0 %v473
  %513 = vmatpush.msra.mxu0 %v472
  %514 = vmatmul.f32.gmra.mxu0 %v449
  %v515 = vpop.f32.mrf.mxu0
  %v516 = vadd.f32 0.0, %v515
  %517 = vmatmul.f32.gmra.mxu0 %v454
  %v518 = vpop.f32.mrf.mxu0
  %v519 = vadd.f32 0.0, %v518
  %520 = vmatmul.f32.gmra.mxu0 %v459
  %v521 = vpop.f32.mrf.mxu0
  %v522 = vadd.f32 0.0, %v521
  %523 = vmatmul.f32.gmra.mxu0 %v464
  %v524 = vpop.f32.mrf.mxu0
  %v525 = vadd.f32 0.0, %v524
  %526 = vdwg.mxu0
  %527 = vmatpush.msra.mxu0 0.0
  %528 = vmatpush.msra.mxu0 0.0
  %529 = vmatpush.msra.mxu0 0.0
  %530 = vmatpush.msra.mxu0 0.0
  %531 = vmatpush.msra.mxu0 0.0
  %532 = vmatpush.msra.mxu0 0.0
  %533 = vmatpush.msra.mxu0 0.0
  %534 = vmatpush.msra.mxu0 0.0
  %535 = vmatpush.msra.mxu0 0.0
  %536 = vmatpush.msra.mxu0 0.0
  %537 = vmatpush.msra.mxu0 0.0
  %538 = vmatpush.msra.mxu0 0.0
  %539 = vmatpush.msra.mxu0 0.0
  %540 = vmatpush.msra.mxu0 0.0
  %541 = vmatpush.msra.mxu0 %v489
  %542 = vmatpush.msra.mxu0 %v488
  %543 = vmatmul.f32.gmra.mxu0 %v490
  %v544 = vpop.f32.mrf.mxu0
  %v545 = vadd.f32 %v516, %v544
  %546 = vmatmul.f32.gmra.mxu0 %v492
  %v547 = vpop.f32.mrf.mxu0
  %v548 = vadd.f32 %v519, %v547
  %549 = vmatmul.f32.gmra.mxu0 %v494
  %v550 = vpop.f32.mrf.mxu0
  %v551 = vadd.f32 %v522, %v550
  %552 = vmatmul.f32.gmra.mxu0 %v496
  %v553 = vpop.f32.mrf.mxu0
  %v554 = vadd.f32 %v525, %v553
  %555 = vdwg.mxu0
  %v557 = vsel %vm340, %v401, 0
  %v559 = vsel %vm340, %v403, 0
  %v562 = vsel %vm340, %v405, 0
  %v564 = vsel %vm340, %v407, 0
  %566 = vmatpush.msra.mxu0 %v423
  %567 = vmatpush.msra.mxu0 %v422
  %568 = vmatpush.msra.mxu0 %v421
  %569 = vmatpush.msra.mxu0 %v420
  %570 = vmatpush.msra.mxu0 %v419
  %571 = vmatpush.msra.mxu0 %v418
  %572 = vmatpush.msra.mxu0 %v417
  %573 = vmatpush.msra.mxu0 %v416
  %574 = vmatpush.msra.mxu0 %v415
  %575 = vmatpush.msra.mxu0 %v414
  %576 = vmatpush.msra.mxu0 %v413
  %577 = vmatpush.msra.mxu0 %v412
  %578 = vmatpush.msra.mxu0 %v411
  %579 = vmatpush.msra.mxu0 %v410
  %580 = vmatpush.msra.mxu0 %v409
  %581 = vmatpush.msra.mxu0 %v408
  %582 = vmatmul.f32.gmra.mxu0 %v400
  %v583 = vpop.f32.mrf.mxu0
  %v584 = vadd.f32 %v545, %v583
  %585 = vmatmul.f32.gmra.mxu0 %v402
  %v586 = vpop.f32.mrf.mxu0
  %v587 = vadd.f32 %v548, %v586
  %588 = vmatmul.f32.gmra.mxu0 %v404
  %v589 = vpop.f32.mrf.mxu0
  %v590 = vadd.f32 %v551, %v589
  %591 = vmatmul.f32.gmra.mxu0 %v406
  %v592 = vpop.f32.mrf.mxu0
  %v593 = vadd.f32 %v554, %v592
  %594 = vdwg.mxu0
  %595 = vmatpush.msra.mxu0 0.0
  %596 = vmatpush.msra.mxu0 0.0
  %597 = vmatpush.msra.mxu0 0.0
  %598 = vmatpush.msra.mxu0 0.0
  %599 = vmatpush.msra.mxu0 0.0
  %600 = vmatpush.msra.mxu0 0.0
  %601 = vmatpush.msra.mxu0 0.0
  %602 = vmatpush.msra.mxu0 0.0
  %603 = vmatpush.msra.mxu0 0.0
  %604 = vmatpush.msra.mxu0 0.0
  %605 = vmatpush.msra.mxu0 0.0
  %606 = vmatpush.msra.mxu0 0.0
  %607 = vmatpush.msra.mxu0 0.0
  %608 = vmatpush.msra.mxu0 0.0
  %609 = vmatpush.msra.mxu0 %v425
  %610 = vmatpush.msra.mxu0 %v424
  %611 = vmatmul.f32.gmra.mxu0 %v557
  %v612 = vpop.f32.mrf.mxu0
  %v613 = vadd.f32 %v584, %v612
  %614 = vmatmul.f32.gmra.mxu0 %v559
  %v615 = vpop.f32.mrf.mxu0
  %v616 = vadd.f32 %v587, %v615
  %617 = vmatmul.f32.gmra.mxu0 %v562
  %v618 = vpop.f32.mrf.mxu0
  %v619 = vadd.f32 %v590, %v618
  %620 = vmatmul.f32.gmra.mxu0 %v564
  %v621 = vpop.f32.mrf.mxu0
  %v622 = vadd.f32 %v593, %v621
  %623 = vdwg.mxu0
  %v624 = vld [vmem:[#allocation2] sm:$0xfc]
  %v625 = vld [vmem:[#allocation2 + $0x8] sm:$0xfc]
  %v626 = vld [vmem:[#allocation2 + $0x20] sm:$0x3]
  %v627 = vld [vmem:[#allocation2 + $0x28] sm:$0x3]
  %v628 = vld [vmem:[#allocation2 + $0x30] sm:$0xfc]
  %v629 = vld [vmem:[#allocation2 + $0x38] sm:$0xfc]
  %v630 = vld [vmem:[#allocation2 + $0x50] sm:$0x3]
  %v631 = vld [vmem:[#allocation2 + $0x58] sm:$0x3]
  %vm640 = vcmask 1045504
  %v641 = vrot.slane %v624, 2
  %v642 = vrot.slane %v402, 2
  %v643 = vsel %vm640, %v641, %v642
  %v644 = vrot.slane %v625, 2
  %v645 = vrot.slane %v403, 2
  %v646 = vsel %vm640, %v644, %v645
  %v647 = vrot.slane %v626, 2
  %v648 = vsel %vm640, %v642, %v647
  %v649 = vrot.slane %v627, 2
  %v650 = vsel %vm640, %v645, %v649
  %v651 = vrot.slane %v628, 2
  %v652 = vrot.slane %v406, 2
  %v653 = vsel %vm640, %v651, %v652
  %v654 = vrot.slane %v629, 2
  %v655 = vrot.slane %v407, 2
  %v656 = vsel %vm640, %v654, %v655
  %v657 = vrot.slane %v630, 2
  %v658 = vsel %vm640, %v652, %v657
  %v659 = vrot.slane %v631, 2
  %v660 = vsel %vm640, %v655, %v659
  %s665 = scalar_lea.vmem %s6, 288
  %v666 = vld [vmem:[%s665] sm:$0xff]
  %v667 = vld [vmem:[%s665 + $0x8] sm:$0xff]
  %v668 = vld [vmem:[%s665 + $0x10] sm:$0xff]
  %v669 = vld [vmem:[%s665 + $0x18] sm:$0xff]
  %v670 = vld [vmem:[%s665 + $0x20] sm:$0xff]
  %v671 = vld [vmem:[%s665 + $0x28] sm:$0xff]
  %v672 = vld [vmem:[%s665 + $0x30] sm:$0xff]
  %v673 = vld [vmem:[%s665 + $0x38] sm:$0xff]
  %v674 = vld [vmem:[%s665 + $0x40] sm:$0xff]
  %v675 = vld [vmem:[%s665 + $0x48] sm:$0xff]
  %v676 = vld [vmem:[%s665 + $0x50] sm:$0xff]
  %v677 = vld [vmem:[%s665 + $0x58] sm:$0xff]
  %v678 = vld [vmem:[%s665 + $0x60] sm:$0xff]
  %v679 = vld [vmem:[%s665 + $0x68] sm:$0xff]
  %v680 = vld [vmem:[%s665 + $0x70] sm:$0xff]
  %v681 = vld [vmem:[%s665 + $0x78] sm:$0xff]
  %v682 = vld [vmem:[%s665 + $0x80] sm:$0xff]
  %v683 = vld [vmem:[%s665 + $0x88] sm:$0xff]
  %v684 = vsel %vm340, %v646, 0
  %v686 = vsel %vm340, %v650, 0
  %v688 = vsel %vm340, %v656, 0
  %v690 = vsel %vm340, %v660, 0
  %692 = vmatpush.msra.mxu0 %v681
  %693 = vmatpush.msra.mxu0 %v680
  %694 = vmatpush.msra.mxu0 %v679
  %695 = vmatpush.msra.mxu0 %v678
  %696 = vmatpush.msra.mxu0 %v677
  %697 = vmatpush.msra.mxu0 %v676
  %698 = vmatpush.msra.mxu0 %v675
  %699 = vmatpush.msra.mxu0 %v674
  %700 = vmatpush.msra.mxu0 %v673
  %701 = vmatpush.msra.mxu0 %v672
  %702 = vmatpush.msra.mxu0 %v671
  %703 = vmatpush.msra.mxu0 %v670
  %704 = vmatpush.msra.mxu0 %v669
  %705 = vmatpush.msra.mxu0 %v668
  %706 = vmatpush.msra.mxu0 %v667
  %707 = vmatpush.msra.mxu0 %v666
  %708 = vmatmul.f32.gmra.mxu0 %v643
  %v709 = vpop.f32.mrf.mxu0
  %v710 = vadd.f32 0.0, %v709
  %711 = vmatmul.f32.gmra.mxu0 %v648
  %v712 = vpop.f32.mrf.mxu0
  %v713 = vadd.f32 0.0, %v712
  %714 = vmatmul.f32.gmra.mxu0 %v653
  %v715 = vpop.f32.mrf.mxu0
  %v716 = vadd.f32 0.0, %v715
  %717 = vmatmul.f32.gmra.mxu0 %v658
  %v718 = vpop.f32.mrf.mxu0
  %v719 = vadd.f32 0.0, %v718
  %720 = vdwg.mxu0
  %721 = vmatpush.msra.mxu0 0.0
  %722 = vmatpush.msra.mxu0 0.0
  %723 = vmatpush.msra.mxu0 0.0
  %724 = vmatpush.msra.mxu0 0.0
  %725 = vmatpush.msra.mxu0 0.0
  %726 = vmatpush.msra.mxu0 0.0
  %727 = vmatpush.msra.mxu0 0.0
  %728 = vmatpush.msra.mxu0 0.0
  %729 = vmatpush.msra.mxu0 0.0
  %730 = vmatpush.msra.mxu0 0.0
  %731 = vmatpush.msra.mxu0 0.0
  %732 = vmatpush.msra.mxu0 0.0
  %733 = vmatpush.msra.mxu0 0.0
  %734 = vmatpush.msra.mxu0 0.0
  %735 = vmatpush.msra.mxu0 %v683
  %736 = vmatpush.msra.mxu0 %v682
  %737 = vmatmul.f32.gmra.mxu0 %v684
  %v738 = vpop.f32.mrf.mxu0
  %v739 = vadd.f32 %v710, %v738
  %740 = vmatmul.f32.gmra.mxu0 %v686
  %v741 = vpop.f32.mrf.mxu0
  %v742 = vadd.f32 %v713, %v741
  %743 = vmatmul.f32.gmra.mxu0 %v688
  %v744 = vpop.f32.mrf.mxu0
  %v745 = vadd.f32 %v716, %v744
  %746 = vmatmul.f32.gmra.mxu0 %v690
  %v747 = vpop.f32.mrf.mxu0
  %v748 = vadd.f32 %v719, %v747
  %749 = vdwg.mxu0
  %v750 = vadd.f32 %v613, %v739
  %v751 = vadd.f32 %v616, %v742
  %v752 = vadd.f32 %v619, %v745
  %v753 = vadd.f32 %v622, %v748
  %v754 = vadd.f32 %v750, %v751
  %v755 = vadd.f32 %v754, %v752
  %v756 = vadd.f32 %v755, %v753
  %v757 = vrot.slane %v756, 4
  %v758 = vadd.f32 %v756, %v757
  %v759 = vrot.slane %v758, 2
  %v760 = vadd.f32 %v758, %v759
  %v761 = vrot.slane %v760, 1
  %v762 = vadd.f32 %v760, %v761
  %v763 = vld [vmem:[%s7] sm:$0xff]
  %v764 = vld [vmem:[%s7 + $0x8] sm:$0xff]
  %v765 = vld [vmem:[%s7 + $0x10] sm:$0xff]
  %v766 = vld [vmem:[%s7 + $0x18] sm:$0xff]
  %v767 = vld [vmem:[%s7 + $0x20] sm:$0xff]
  %v768 = vld [vmem:[%s7 + $0x28] sm:$0xff]
  %v769 = vld [vmem:[%s7 + $0x30] sm:$0xff]
  %v770 = vld [vmem:[%s7 + $0x38] sm:$0xff]
  %v771 = vld [vmem:[%s7 + $0x40] sm:$0xff]
  %v772 = vld [vmem:[%s7 + $0x48] sm:$0xff]
  %v773 = vld [vmem:[%s7 + $0x50] sm:$0xff]
  %v774 = vld [vmem:[%s7 + $0x58] sm:$0xff]
  %v775 = vld [vmem:[%s7 + $0x60] sm:$0xff]
  %v776 = vld [vmem:[%s7 + $0x68] sm:$0xff]
  %v777 = vld [vmem:[%s7 + $0x70] sm:$0xff]
  %v778 = vld [vmem:[%s7 + $0x78] sm:$0xff]
  %779 = vmatpush.msra.mxu0 %v778
  %780 = vmatpush.msra.mxu0 %v777
  %781 = vmatpush.msra.mxu0 %v776
  %782 = vmatpush.msra.mxu0 %v775
  %783 = vmatpush.msra.mxu0 %v774
  %784 = vmatpush.msra.mxu0 %v773
  %785 = vmatpush.msra.mxu0 %v772
  %786 = vmatpush.msra.mxu0 %v771
  %787 = vmatpush.msra.mxu0 %v770
  %788 = vmatpush.msra.mxu0 %v769
  %789 = vmatpush.msra.mxu0 %v768
  %790 = vmatpush.msra.mxu0 %v767
  %791 = vmatpush.msra.mxu0 %v766
  %792 = vmatpush.msra.mxu0 %v765
  %793 = vmatpush.msra.mxu0 %v764
  %794 = vmatpush.msra.mxu0 %v763
  %795 = vmatmul.f32.gmra.mxu0 %v762
  %v796 = vpop.f32.mrf.mxu0
  %v797 = vadd.f32 0.0, %v796
  %798 = vdwg.mxu0
  %v799 = vmul.f32 %v750, %v750
  %v800 = vmul.f32 %v751, %v751
  %v801 = vmul.f32 %v752, %v752
  %v802 = vmul.f32 %v753, %v753
  %v803 = vadd.f32 %v799, %v800
  %v804 = vadd.f32 %v803, %v801
  %v805 = vadd.f32 %v804, %v802
  %v806 = vrot.slane %v805, 4
  %v807 = vadd.f32 %v805, %v806
  %v808 = vrot.slane %v807, 2
  %v809 = vadd.f32 %v807, %v808
  %v810 = vrot.slane %v809, 1
  %v811 = vadd.f32 %v809, %v810
  %812 = vmatpush.msra.mxu0 %v778
  %813 = vmatpush.msra.mxu0 %v777
  %814 = vmatpush.msra.mxu0 %v776
  %815 = vmatpush.msra.mxu0 %v775
  %816 = vmatpush.msra.mxu0 %v774
  %817 = vmatpush.msra.mxu0 %v773
  %818 = vmatpush.msra.mxu0 %v772
  %819 = vmatpush.msra.mxu0 %v771
  %820 = vmatpush.msra.mxu0 %v770
  %821 = vmatpush.msra.mxu0 %v769
  %822 = vmatpush.msra.mxu0 %v768
  %823 = vmatpush.msra.mxu0 %v767
  %824 = vmatpush.msra.mxu0 %v766
  %825 = vmatpush.msra.mxu0 %v765
  %826 = vmatpush.msra.mxu0 %v764
  %827 = vmatpush.msra.mxu0 %v763
  %828 = vmatmul.f32.gmra.mxu0 %v811
  %v829 = vpop.f32.mrf.mxu0
  %v830 = vadd.f32 0.0, %v829
  %831 = vdwg.mxu0
  %v832 = vmul.f32 %v797, %v797
  %v833 = vsub.f32 %v830, %v832
  %v834 = vadd.f32 %v833, 1e-05
  %v835 = vrsqrt.pop %v834
  %v836 = vmul.f32 %v835, %v834
  %v837 = vmul.f32 %v836, %v835
  %v838 = vmul.f32 0.5, %v837
  %v839 = vsub.f32 1.5, %v838
  %v840 = vmul.f32 %v835, %v839
  %vm841 = vweird.f32 %v834
  %vm842 = vweird.f32 %v835
  %vm843 = vmor %vm841, %vm842
  %v844 = vsel %vm843, %v835, %v840
  %v845 = vperm.slane %v797, 0
  %v846 = vsub.f32 %v750, %v845
  %v847 = vsub.f32 %v751, %v845
  %v848 = vsub.f32 %v752, %v845
  %v849 = vsub.f32 %v753, %v845
  %v850 = vld [vmem:[%s8] sm:$0x1]
  %v851 = vmul.f32 %v844, %v850
  %v852 = vperm.slane %v851, 0
  %v853 = vmul.f32 %v846, %v852
  %v854 = vmul.f32 %v847, %v852
  %v855 = vmul.f32 %v848, %v852
  %v856 = vmul.f32 %v849, %v852
  %v857 = vld [vmem:[%s9] sm:$0x1]
  %v859 = vperm.slane %v857, 0
  %v861 = vadd.f32 %v853, %v859
  %v862 = vadd.f32 %v854, %v859
  %v863 = vadd.f32 %v855, %v859
  %v864 = vadd.f32 %v856, %v859
  %vm865 = vcmp.gt.f32.partialorder %v861, 0.0
  %vm866 = vcmp.gt.f32.partialorder %v862, 0.0
  %vm867 = vcmp.gt.f32.partialorder %v863, 0.0
  %vm868 = vcmp.gt.f32.partialorder %v864, 0.0
  %v869 = vmul.f32 %v861, 0.2
  %v870 = vmul.f32 %v862, 0.2
  %v871 = vmul.f32 %v863, 0.2
  %v872 = vmul.f32 %v864, 0.2
  %v873 = vsel %vm865, %v861, %v869
  %v874 = vsel %vm866, %v862, %v870
  %v875 = vsel %vm867, %v863, %v871
  %v876 = vsel %vm868, %v864, %v872
  %877 = vst [vmem:[#allocation3] sm:$0xff] 0.0
  %878 = vst.msk [vmem:[#allocation3 + $0x8] sm:$0xff] %vm340, 0.0
  %879 = vst [vmem:[#allocation3 + $0x10] sm:$0xff] 0.0
  %880 = vst.msk [vmem:[#allocation3 + $0x18] sm:$0xff] %vm340, 0.0
  %881 = vst [vmem:[#allocation3 + $0x20] sm:$0x3] 0.0
  %882 = vst.msk [vmem:[#allocation3 + $0x28] sm:$0x3] %vm345, 0.0
  %883 = vst [vmem:[#allocation3 + $0x30] sm:$0xff] 0.0
  %884 = vst.msk [vmem:[#allocation3 + $0x38] sm:$0xff] %vm340, 0.0
  %885 = vst [vmem:[#allocation3 + $0x40] sm:$0xff] 0.0
  %886 = vst.msk [vmem:[#allocation3 + $0x48] sm:$0xff] %vm340, 0.0
  %887 = vst [vmem:[#allocation3 + $0x50] sm:$0x3] 0.0
  %888 = vst.msk [vmem:[#allocation3 + $0x58] sm:$0x3] %vm345, 0.0
  %v893 = vrot.slane %v873, 7
  %v894 = vrot.slane %v874, 7
  %v895 = vsel %vm357, %v893, %v894
  %v896 = vrot.slane %v875, 7
  %v897 = vrot.slane %v876, 7
  %v898 = vsel %vm357, %v896, %v897
  %899 = vrot.lane.b32.xlu0 %v893, 8
  %v900 = vpop.permute.xlu0 %899
  %901 = vrot.lane.b32.xlu0 %v895, 8
  %v902 = vpop.permute.xlu0 %901
  %903 = vrot.lane.b32.xlu0 %v894, 8
  %v904 = vpop.permute.xlu0 %903
  %905 = vrot.lane.b32.xlu0 %v896, 8
  %v906 = vpop.permute.xlu0 %905
  %907 = vrot.lane.b32.xlu0 %v898, 8
  %v908 = vpop.permute.xlu0 %907
  %909 = vrot.lane.b32.xlu0 %v897, 8
  %v910 = vpop.permute.xlu0 %909
  %917 = vst.msk [vmem:[#allocation3] sm:$0xfe] %vm382, %v900
  %918 = vst.msk [vmem:[#allocation3 + $0x8] sm:$0xfe] %vm384, %v900
  %919 = vst.msk [vmem:[#allocation3 + $0x10] sm:$0xff] %vm386, %v902
  %920 = vst.msk [vmem:[#allocation3 + $0x18] sm:$0xff] %vm388, %v902
  %921 = vst.msk [vmem:[#allocation3 + $0x20] sm:$0x1] %vm390, %v904
  %922 = vst.msk [vmem:[#allocation3 + $0x28] sm:$0x1] %vm392, %v904
  %923 = vst.msk [vmem:[#allocation3 + $0x30] sm:$0xfe] %vm382, %v906
  %924 = vst.msk [vmem:[#allocation3 + $0x38] sm:$0xfe] %vm384, %v906
  %925 = vst.msk [vmem:[#allocation3 + $0x40] sm:$0xff] %vm386, %v908
  %926 = vst.msk [vmem:[#allocation3 + $0x48] sm:$0xff] %vm388, %v908
  %927 = vst.msk [vmem:[#allocation3 + $0x50] sm:$0x1] %vm390, %v910
  %928 = vst.msk [vmem:[#allocation3 + $0x58] sm:$0x1] %vm392, %v910
  %v929 = vld [vmem:[#allocation3] sm:$0xff]
  %v930 = vld [vmem:[#allocation3 + $0x8] sm:$0xff]
  %v931 = vld [vmem:[#allocation3 + $0x10] sm:$0xff]
  %v932 = vld [vmem:[#allocation3 + $0x18] sm:$0xff]
  %v933 = vld [vmem:[#allocation3 + $0x30] sm:$0xff]
  %v934 = vld [vmem:[#allocation3 + $0x38] sm:$0xff]
  %v935 = vld [vmem:[#allocation3 + $0x40] sm:$0xff]
  %v936 = vld [vmem:[#allocation3 + $0x48] sm:$0xff]
  %v937 = vld [vmem:[%s10] sm:$0xff]
  %v938 = vld [vmem:[%s10 + $0x8] sm:$0xff]
  %v939 = vld [vmem:[%s10 + $0x10] sm:$0xff]
  %v940 = vld [vmem:[%s10 + $0x18] sm:$0xff]
  %v941 = vld [vmem:[%s10 + $0x20] sm:$0xff]
  %v942 = vld [vmem:[%s10 + $0x28] sm:$0xff]
  %v943 = vld [vmem:[%s10 + $0x30] sm:$0xff]
  %v944 = vld [vmem:[%s10 + $0x38] sm:$0xff]
  %v945 = vld [vmem:[%s10 + $0x40] sm:$0xff]
  %v946 = vld [vmem:[%s10 + $0x48] sm:$0xff]
  %v947 = vld [vmem:[%s10 + $0x50] sm:$0xff]
  %v948 = vld [vmem:[%s10 + $0x58] sm:$0xff]
  %v949 = vld [vmem:[%s10 + $0x60] sm:$0xff]
  %v950 = vld [vmem:[%s10 + $0x68] sm:$0xff]
  %v951 = vld [vmem:[%s10 + $0x70] sm:$0xff]
  %v952 = vld [vmem:[%s10 + $0x78] sm:$0xff]
  %v953 = vld [vmem:[%s10 + $0x80] sm:$0xff]
  %v954 = vld [vmem:[%s10 + $0x88] sm:$0xff]
  %v955 = vld [vmem:[#allocation3] sm:$0xfe]
  %v956 = vld [vmem:[#allocation3 + $0x8] sm:$0xfe]
  %v957 = vld [vmem:[#allocation3 + $0x20] sm:$0x1]
  %v958 = vld [vmem:[#allocation3 + $0x28] sm:$0x1]
  %v959 = vld [vmem:[#allocation3 + $0x30] sm:$0xfe]
  %v960 = vld [vmem:[#allocation3 + $0x38] sm:$0xfe]
  %v961 = vld [vmem:[#allocation3 + $0x50] sm:$0x1]
  %v962 = vld [vmem:[#allocation3 + $0x58] sm:$0x1]
  %v975 = vrot.slane %v955, 1
  %v976 = vrot.slane %v931, 1
  %v977 = vsel %vm446, %v975, %v976
  %v978 = vrot.slane %v956, 1
  %v979 = vrot.slane %v932, 1
  %v980 = vsel %vm446, %v978, %v979
  %v981 = vrot.slane %v957, 1
  %v982 = vsel %vm446, %v976, %v981
  %v983 = vrot.slane %v958, 1
  %v984 = vsel %vm446, %v979, %v983
  %v985 = vrot.slane %v959, 1
  %v986 = vrot.slane %v935, 1
  %v987 = vsel %vm446, %v985, %v986
  %v988 = vrot.slane %v960, 1
  %v989 = vrot.slane %v936, 1
  %v990 = vsel %vm446, %v988, %v989
  %v991 = vrot.slane %v961, 1
  %v992 = vsel %vm446, %v986, %v991
  %v993 = vrot.slane %v962, 1
  %v994 = vsel %vm446, %v989, %v993
  %s999 = scalar_lea.vmem %s10, 144
  %v1000 = vld [vmem:[%s999] sm:$0xff]
  %v1001 = vld [vmem:[%s999 + $0x8] sm:$0xff]
  %v1002 = vld [vmem:[%s999 + $0x10] sm:$0xff]
  %v1003 = vld [vmem:[%s999 + $0x18] sm:$0xff]
  %v1004 = vld [vmem:[%s999 + $0x20] sm:$0xff]
  %v1005 = vld [vmem:[%s999 + $0x28] sm:$0xff]
  %v1006 = vld [vmem:[%s999 + $0x30] sm:$0xff]
  %v1007 = vld [vmem:[%s999 + $0x38] sm:$0xff]
  %v1008 = vld [vmem:[%s999 + $0x40] sm:$0xff]
  %v1009 = vld [vmem:[%s999 + $0x48] sm:$0xff]
  %v1010 = vld [vmem:[%s999 + $0x50] sm:$0xff]
  %v1011 = vld [vmem:[%s999 + $0x58] sm:$0xff]
  %v1012 = vld [vmem:[%s999 + $0x60] sm:$0xff]
  %v1013 = vld [vmem:[%s999 + $0x68] sm:$0xff]
  %v1014 = vld [vmem:[%s999 + $0x70] sm:$0xff]
  %v1015 = vld [vmem:[%s999 + $0x78] sm:$0xff]
  %v1016 = vld [vmem:[%s999 + $0x80] sm:$0xff]
  %v1017 = vld [vmem:[%s999 + $0x88] sm:$0xff]
  %v1018 = vsel %vm340, %v980, 0
  %v1020 = vsel %vm340, %v984, 0
  %v1022 = vsel %vm340, %v990, 0
  %v1024 = vsel %vm340, %v994, 0
  %1026 = vmatpush.msra.mxu0 %v1015
  %1027 = vmatpush.msra.mxu0 %v1014
  %1028 = vmatpush.msra.mxu0 %v1013
  %1029 = vmatpush.msra.mxu0 %v1012
  %1030 = vmatpush.msra.mxu0 %v1011
  %1031 = vmatpush.msra.mxu0 %v1010
  %1032 = vmatpush.msra.mxu0 %v1009
  %1033 = vmatpush.msra.mxu0 %v1008
  %1034 = vmatpush.msra.mxu0 %v1007
  %1035 = vmatpush.msra.mxu0 %v1006
  %1036 = vmatpush.msra.mxu0 %v1005
  %1037 = vmatpush.msra.mxu0 %v1004
  %1038 = vmatpush.msra.mxu0 %v1003
  %1039 = vmatpush.msra.mxu0 %v1002
  %1040 = vmatpush.msra.mxu0 %v1001
  %1041 = vmatpush.msra.mxu0 %v1000
  %1042 = vmatmul.f32.gmra.mxu0 %v977
  %v1043 = vpop.f32.mrf.mxu0
  %v1044 = vadd.f32 0.0, %v1043
  %1045 = vmatmul.f32.gmra.mxu0 %v982
  %v1046 = vpop.f32.mrf.mxu0
  %v1047 = vadd.f32 0.0, %v1046
  %1048 = vmatmul.f32.gmra.mxu0 %v987
  %v1049 = vpop.f32.mrf.mxu0
  %v1050 = vadd.f32 0.0, %v1049
  %1051 = vmatmul.f32.gmra.mxu0 %v992
  %v1052 = vpop.f32.mrf.mxu0
  %v1053 = vadd.f32 0.0, %v1052
  %1054 = vdwg.mxu0
  %1055 = vmatpush.msra.mxu0 0.0
  %1056 = vmatpush.msra.mxu0 0.0
  %1057 = vmatpush.msra.mxu0 0.0
  %1058 = vmatpush.msra.mxu0 0.0
  %1059 = vmatpush.msra.mxu0 0.0
  %1060 = vmatpush.msra.mxu0 0.0
  %1061 = vmatpush.msra.mxu0 0.0
  %1062 = vmatpush.msra.mxu0 0.0
  %1063 = vmatpush.msra.mxu0 0.0
  %1064 = vmatpush.msra.mxu0 0.0
  %1065 = vmatpush.msra.mxu0 0.0
  %1066 = vmatpush.msra.mxu0 0.0
  %1067 = vmatpush.msra.mxu0 0.0
  %1068 = vmatpush.msra.mxu0 0.0
  %1069 = vmatpush.msra.mxu0 %v1017
  %1070 = vmatpush.msra.mxu0 %v1016
  %1071 = vmatmul.f32.gmra.mxu0 %v1018
  %v1072 = vpop.f32.mrf.mxu0
  %v1073 = vadd.f32 %v1044, %v1072
  %1074 = vmatmul.f32.gmra.mxu0 %v1020
  %v1075 = vpop.f32.mrf.mxu0
  %v1076 = vadd.f32 %v1047, %v1075
  %1077 = vmatmul.f32.gmra.mxu0 %v1022
  %v1078 = vpop.f32.mrf.mxu0
  %v1079 = vadd.f32 %v1050, %v1078
  %1080 = vmatmul.f32.gmra.mxu0 %v1024
  %v1081 = vpop.f32.mrf.mxu0
  %v1082 = vadd.f32 %v1053, %v1081
  %1083 = vdwg.mxu0
  %v1085 = vsel %vm340, %v930, 0
  %v1087 = vsel %vm340, %v932, 0
  %v1090 = vsel %vm340, %v934, 0
  %v1092 = vsel %vm340, %v936, 0
  %1094 = vmatpush.msra.mxu0 %v952
  %1095 = vmatpush.msra.mxu0 %v951
  %1096 = vmatpush.msra.mxu0 %v950
  %1097 = vmatpush.msra.mxu0 %v949
  %1098 = vmatpush.msra.mxu0 %v948
  %1099 = vmatpush.msra.mxu0 %v947
  %1100 = vmatpush.msra.mxu0 %v946
  %1101 = vmatpush.msra.mxu0 %v945
  %1102 = vmatpush.msra.mxu0 %v944
  %1103 = vmatpush.msra.mxu0 %v943
  %1104 = vmatpush.msra.mxu0 %v942
  %1105 = vmatpush.msra.mxu0 %v941
  %1106 = vmatpush.msra.mxu0 %v940
  %1107 = vmatpush.msra.mxu0 %v939
  %1108 = vmatpush.msra.mxu0 %v938
  %1109 = vmatpush.msra.mxu0 %v937
  %1110 = vmatmul.f32.gmra.mxu0 %v929
  %v1111 = vpop.f32.mrf.mxu0
  %v1112 = vadd.f32 %v1073, %v1111
  %1113 = vmatmul.f32.gmra.mxu0 %v931
  %v1114 = vpop.f32.mrf.mxu0
  %v1115 = vadd.f32 %v1076, %v1114
  %1116 = vmatmul.f32.gmra.mxu0 %v933
  %v1117 = vpop.f32.mrf.mxu0
  %v1118 = vadd.f32 %v1079, %v1117
  %1119 = vmatmul.f32.gmra.mxu0 %v935
  %v1120 = vpop.f32.mrf.mxu0
  %v1121 = vadd.f32 %v1082, %v1120
  %1122 = vdwg.mxu0
  %1123 = vmatpush.msra.mxu0 0.0
  %1124 = vmatpush.msra.mxu0 0.0
  %1125 = vmatpush.msra.mxu0 0.0
  %1126 = vmatpush.msra.mxu0 0.0
  %1127 = vmatpush.msra.mxu0 0.0
  %1128 = vmatpush.msra.mxu0 0.0
  %1129 = vmatpush.msra.mxu0 0.0
  %1130 = vmatpush.msra.mxu0 0.0
  %1131 = vmatpush.msra.mxu0 0.0
  %1132 = vmatpush.msra.mxu0 0.0
  %1133 = vmatpush.msra.mxu0 0.0
  %1134 = vmatpush.msra.mxu0 0.0
  %1135 = vmatpush.msra.mxu0 0.0
  %1136 = vmatpush.msra.mxu0 0.0
  %1137 = vmatpush.msra.mxu0 %v954
  %1138 = vmatpush.msra.mxu0 %v953
  %1139 = vmatmul.f32.gmra.mxu0 %v1085
  %v1140 = vpop.f32.mrf.mxu0
  %v1141 = vadd.f32 %v1112, %v1140
  %1142 = vmatmul.f32.gmra.mxu0 %v1087
  %v1143 = vpop.f32.mrf.mxu0
  %v1144 = vadd.f32 %v1115, %v1143
  %1145 = vmatmul.f32.gmra.mxu0 %v1090
  %v1146 = vpop.f32.mrf.mxu0
  %v1147 = vadd.f32 %v1118, %v1146
  %1148 = vmatmul.f32.gmra.mxu0 %v1092
  %v1149 = vpop.f32.mrf.mxu0
  %v1150 = vadd.f32 %v1121, %v1149
  %1151 = vdwg.mxu0
  %v1152 = vld [vmem:[#allocation3] sm:$0xfc]
  %v1153 = vld [vmem:[#allocation3 + $0x8] sm:$0xfc]
  %v1154 = vld [vmem:[#allocation3 + $0x20] sm:$0x3]
  %v1155 = vld [vmem:[#allocation3 + $0x28] sm:$0x3]
  %v1156 = vld [vmem:[#allocation3 + $0x30] sm:$0xfc]
  %v1157 = vld [vmem:[#allocation3 + $0x38] sm:$0xfc]
  %v1158 = vld [vmem:[#allocation3 + $0x50] sm:$0x3]
  %v1159 = vld [vmem:[#allocation3 + $0x58] sm:$0x3]
  %v1168 = vrot.slane %v1152, 2
  %v1169 = vrot.slane %v931, 2
  %v1170 = vsel %vm640, %v1168, %v1169
  %v1171 = vrot.slane %v1153, 2
  %v1172 = vrot.slane %v932, 2
  %v1173 = vsel %vm640, %v1171, %v1172
  %v1174 = vrot.slane %v1154, 2
  %v1175 = vsel %vm640, %v1169, %v1174
  %v1176 = vrot.slane %v1155, 2
  %v1177 = vsel %vm640, %v1172, %v1176
  %v1178 = vrot.slane %v1156, 2
  %v1179 = vrot.slane %v935, 2
  %v1180 = vsel %vm640, %v1178, %v1179
  %v1181 = vrot.slane %v1157, 2
  %v1182 = vrot.slane %v936, 2
  %v1183 = vsel %vm640, %v1181, %v1182
  %v1184 = vrot.slane %v1158, 2
  %v1185 = vsel %vm640, %v1179, %v1184
  %v1186 = vrot.slane %v1159, 2
  %v1187 = vsel %vm640, %v1182, %v1186
  %s1192 = scalar_lea.vmem %s10, 288
  %v1193 = vld [vmem:[%s1192] sm:$0xff]
  %v1194 = vld [vmem:[%s1192 + $0x8] sm:$0xff]
  %v1195 = vld [vmem:[%s1192 + $0x10] sm:$0xff]
  %v1196 = vld [vmem:[%s1192 + $0x18] sm:$0xff]
  %v1197 = vld [vmem:[%s1192 + $0x20] sm:$0xff]
  %v1198 = vld [vmem:[%s1192 + $0x28] sm:$0xff]
  %v1199 = vld [vmem:[%s1192 + $0x30] sm:$0xff]
  %v1200 = vld [vmem:[%s1192 + $0x38] sm:$0xff]
  %v1201 = vld [vmem:[%s1192 + $0x40] sm:$0xff]
  %v1202 = vld [vmem:[%s1192 + $0x48] sm:$0xff]
  %v1203 = vld [vmem:[%s1192 + $0x50] sm:$0xff]
  %v1204 = vld [vmem:[%s1192 + $0x58] sm:$0xff]
  %v1205 = vld [vmem:[%s1192 + $0x60] sm:$0xff]
  %v1206 = vld [vmem:[%s1192 + $0x68] sm:$0xff]
  %v1207 = vld [vmem:[%s1192 + $0x70] sm:$0xff]
  %v1208 = vld [vmem:[%s1192 + $0x78] sm:$0xff]
  %v1209 = vld [vmem:[%s1192 + $0x80] sm:$0xff]
  %v1210 = vld [vmem:[%s1192 + $0x88] sm:$0xff]
  %v1211 = vsel %vm340, %v1173, 0
  %v1213 = vsel %vm340, %v1177, 0
  %v1215 = vsel %vm340, %v1183, 0
  %v1217 = vsel %vm340, %v1187, 0
  %1219 = vmatpush.msra.mxu0 %v1208
  %1220 = vmatpush.msra.mxu0 %v1207
  %1221 = vmatpush.msra.mxu0 %v1206
  %1222 = vmatpush.msra.mxu0 %v1205
  %1223 = vmatpush.msra.mxu0 %v1204
  %1224 = vmatpush.msra.mxu0 %v1203
  %1225 = vmatpush.msra.mxu0 %v1202
  %1226 = vmatpush.msra.mxu0 %v1201
  %1227 = vmatpush.msra.mxu0 %v1200
  %1228 = vmatpush.msra.mxu0 %v1199
  %1229 = vmatpush.msra.mxu0 %v1198
  %1230 = vmatpush.msra.mxu0 %v1197
  %1231 = vmatpush.msra.mxu0 %v1196
  %1232 = vmatpush.msra.mxu0 %v1195
  %1233 = vmatpush.msra.mxu0 %v1194
  %1234 = vmatpush.msra.mxu0 %v1193
  %1235 = vmatmul.f32.gmra.mxu0 %v1170
  %v1236 = vpop.f32.mrf.mxu0
  %v1237 = vadd.f32 0.0, %v1236
  %1238 = vmatmul.f32.gmra.mxu0 %v1175
  %v1239 = vpop.f32.mrf.mxu0
  %v1240 = vadd.f32 0.0, %v1239
  %1241 = vmatmul.f32.gmra.mxu0 %v1180
  %v1242 = vpop.f32.mrf.mxu0
  %v1243 = vadd.f32 0.0, %v1242
  %1244 = vmatmul.f32.gmra.mxu0 %v1185
  %v1245 = vpop.f32.mrf.mxu0
  %v1246 = vadd.f32 0.0, %v1245
  %1247 = vdwg.mxu0
  %1248 = vmatpush.msra.mxu0 0.0
  %1249 = vmatpush.msra.mxu0 0.0
  %1250 = vmatpush.msra.mxu0 0.0
  %1251 = vmatpush.msra.mxu0 0.0
  %1252 = vmatpush.msra.mxu0 0.0
  %1253 = vmatpush.msra.mxu0 0.0
  %1254 = vmatpush.msra.mxu0 0.0
  %1255 = vmatpush.msra.mxu0 0.0
  %1256 = vmatpush.msra.mxu0 0.0
  %1257 = vmatpush.msra.mxu0 0.0
  %1258 = vmatpush.msra.mxu0 0.0
  %1259 = vmatpush.msra.mxu0 0.0
  %1260 = vmatpush.msra.mxu0 0.0
  %1261 = vmatpush.msra.mxu0 0.0
  %1262 = vmatpush.msra.mxu0 %v1210
  %1263 = vmatpush.msra.mxu0 %v1209
  %1264 = vmatmul.f32.gmra.mxu0 %v1211
  %v1265 = vpop.f32.mrf.mxu0
  %v1266 = vadd.f32 %v1237, %v1265
  %1267 = vmatmul.f32.gmra.mxu0 %v1213
  %v1268 = vpop.f32.mrf.mxu0
  %v1269 = vadd.f32 %v1240, %v1268
  %1270 = vmatmul.f32.gmra.mxu0 %v1215
  %v1271 = vpop.f32.mrf.mxu0
  %v1272 = vadd.f32 %v1243, %v1271
  %1273 = vmatmul.f32.gmra.mxu0 %v1217
  %v1274 = vpop.f32.mrf.mxu0
  %v1275 = vadd.f32 %v1246, %v1274
  %1276 = vdwg.mxu0
  %v1277 = vadd.f32 %v1141, %v1266
  %v1278 = vadd.f32 %v1144, %v1269
  %v1279 = vadd.f32 %v1147, %v1272
  %v1280 = vadd.f32 %v1150, %v1275
  %vm1281 = vcmask 523264
  %v1282 = vsel %vm1281, %v1277, 0.0
  %v1283 = vsel %vm1281, %v1278, 0.0
  %v1284 = vadd.f32 %v1282, %v1283
  %v1285 = vsel %vm1281, %v1279, 0.0
  %v1286 = vadd.f32 %v1284, %v1285
  %v1287 = vsel %vm1281, %v1280, 0.0
  %v1288 = vadd.f32 %v1286, %v1287
  %v1289 = vrot.slane %v1288, 4
  %v1290 = vadd.f32 %v1288, %v1289
  %v1291 = vrot.slane %v1290, 2
  %v1292 = vadd.f32 %v1290, %v1291
  %v1293 = vrot.slane %v1292, 1
  %v1294 = vadd.f32 %v1292, %v1293
  %v1295 = vld [vmem:[%s11] sm:$0xff]
  %v1296 = vld [vmem:[%s11 + $0x8] sm:$0xff]
  %v1297 = vld [vmem:[%s11 + $0x10] sm:$0xff]
  %v1298 = vld [vmem:[%s11 + $0x18] sm:$0xff]
  %v1299 = vld [vmem:[%s11 + $0x20] sm:$0xff]
  %v1300 = vld [vmem:[%s11 + $0x28] sm:$0xff]
  %v1301 = vld [vmem:[%s11 + $0x30] sm:$0xff]
  %v1302 = vld [vmem:[%s11 + $0x38] sm:$0xff]
  %v1304 = vsel %vm1281, %v1294, 0
  %1306 = vmatpush.msra.mxu0 0.0
  %1307 = vmatpush.msra.mxu0 0.0
  %1308 = vmatpush.msra.mxu0 0.0
  %1309 = vmatpush.msra.mxu0 0.0
  %1310 = vmatpush.msra.mxu0 0.0
  %1311 = vmatpush.msra.mxu0 0.0
  %1312 = vmatpush.msra.mxu0 0.0
  %1313 = vmatpush.msra.mxu0 0.0
  %1314 = vmatpush.msra.mxu0 %v1302
  %1315 = vmatpush.msra.mxu0 %v1301
  %1316 = vmatpush.msra.mxu0 %v1300
  %1317 = vmatpush.msra.mxu0 %v1299
  %1318 = vmatpush.msra.mxu0 %v1298
  %1319 = vmatpush.msra.mxu0 %v1297
  %1320 = vmatpush.msra.mxu0 %v1296
  %1321 = vmatpush.msra.mxu0 %v1295
  %1322 = vmatmul.f32.gmra.mxu0 %v1304
  %v1323 = vpop.f32.mrf.mxu0
  %v1324 = vadd.f32 0.0, %v1323
  %1325 = vdwg.mxu0
  %v1326 = vmul.f32 %v1277, %v1277
  %v1327 = vmul.f32 %v1278, %v1278
  %v1328 = vmul.f32 %v1279, %v1279
  %v1329 = vmul.f32 %v1280, %v1280
  %v1330 = vsel %vm1281, %v1326, 0.0
  %v1331 = vsel %vm1281, %v1327, 0.0
  %v1332 = vadd.f32 %v1330, %v1331
  %v1333 = vsel %vm1281, %v1328, 0.0
  %v1334 = vadd.f32 %v1332, %v1333
  %v1335 = vsel %vm1281, %v1329, 0.0
  %v1336 = vadd.f32 %v1334, %v1335
  %v1337 = vrot.slane %v1336, 4
  %v1338 = vadd.f32 %v1336, %v1337
  %v1339 = vrot.slane %v1338, 2
  %v1340 = vadd.f32 %v1338, %v1339
  %v1341 = vrot.slane %v1340, 1
  %v1342 = vadd.f32 %v1340, %v1341
  %v1344 = vsel %vm1281, %v1342, 0
  %1346 = vmatpush.msra.mxu0 0.0
  %1347 = vmatpush.msra.mxu0 0.0
  %1348 = vmatpush.msra.mxu0 0.0
  %1349 = vmatpush.msra.mxu0 0.0
  %1350 = vmatpush.msra.mxu0 0.0
  %1351 = vmatpush.msra.mxu0 0.0
  %1352 = vmatpush.msra.mxu0 0.0
  %1353 = vmatpush.msra.mxu0 0.0
  %1354 = vmatpush.msra.mxu0 %v1302
  %1355 = vmatpush.msra.mxu0 %v1301
  %1356 = vmatpush.msra.mxu0 %v1300
  %1357 = vmatpush.msra.mxu0 %v1299
  %1358 = vmatpush.msra.mxu0 %v1298
  %1359 = vmatpush.msra.mxu0 %v1297
  %1360 = vmatpush.msra.mxu0 %v1296
  %1361 = vmatpush.msra.mxu0 %v1295
  %1362 = vmatmul.f32.gmra.mxu0 %v1344
  %v1363 = vpop.f32.mrf.mxu0
  %v1364 = vadd.f32 0.0, %v1363
  %1365 = vdwg.mxu0
  %v1366 = vmul.f32 %v1324, %v1324
  %v1367 = vsub.f32 %v1364, %v1366
  %v1368 = vadd.f32 %v1367, 1e-05
  %v1369 = vrsqrt.pop %v1368
  %v1370 = vmul.f32 %v1369, %v1368
  %v1371 = vmul.f32 %v1370, %v1369
  %v1372 = vmul.f32 0.5, %v1371
  %v1373 = vsub.f32 1.5, %v1372
  %v1374 = vmul.f32 %v1369, %v1373
  %vm1375 = vweird.f32 %v1368
  %vm1376 = vweird.f32 %v1369
  %vm1377 = vmor %vm1375, %vm1376
  %v1378 = vsel %vm1377, %v1369, %v1374
  %v1379 = vperm.slane %v1324, 0
  %v1380 = vsub.f32 %v1277, %v1379
  %v1381 = vsub.f32 %v1278, %v1379
  %v1382 = vsub.f32 %v1279, %v1379
  %v1383 = vsub.f32 %v1280, %v1379
  %v1384 = vld [vmem:[%s12] sm:$0x1]
  %v1385 = vmul.f32 %v1378, %v1384
  %v1386 = vperm.slane %v1385, 0
  %v1387 = vmul.f32 %v1380, %v1386
  %v1388 = vmul.f32 %v1381, %v1386
  %v1389 = vmul.f32 %v1382, %v1386
  %v1390 = vmul.f32 %v1383, %v1386
  %v1391 = vld [vmem:[%s13] sm:$0x1]
  %v1393 = vperm.slane %v1391, 0
  %v1395 = vadd.f32 %v1387, %v1393
  %v1396 = vadd.f32 %v1388, %v1393
  %v1397 = vadd.f32 %v1389, %v1393
  %v1398 = vadd.f32 %v1390, %v1393
  %v1399 = vld [vmem:[%s1] sm:$0xff]
  %v1400 = vld [vmem:[%s1 + $0x8] sm:$0xff]
  %v1401 = vld [vmem:[%s1 + $0x10] sm:$0xff]
  %v1402 = vld [vmem:[%s1 + $0x18] sm:$0xff]
  %v1403 = vadd.f32 %v1395, %v1399
  %v1404 = vadd.f32 %v1396, %v1400
  %v1405 = vadd.f32 %v1397, %v1401
  %v1406 = vadd.f32 %v1398, %v1402
  %1407 = vst.msk [vmem:[%s14] sm:$0xff] %vm1281, %v1403
  %1408 = vst.msk [vmem:[%s14 + $0x8] sm:$0xff] %vm1281, %v1404
  %1409 = vst.msk [vmem:[%s14 + $0x10] sm:$0xff] %vm1281, %v1405
  %1410 = vst.msk [vmem:[%s14 + $0x18] sm:$0xff] %vm1281, %v1406
  // Predicated region
  $region58: #{residual_block_2d.1} parent=0 // pred_check
    _
  $region59: #{residual_block_2d.1} parent=0 // pred_check_branch
    %1412 = sbr.rel (0) target = $region61
  $region60: #{residual_block_2d.1} parent=0 // pred_region
    _
  $region61: #{residual_block_2d.1} parent=0 // pred_fallthru
    _
  // Predicated region
  $region62: #{residual_block_2d.1} parent=0 // pred_check
    _
  $region63: #{residual_block_2d.1} parent=0 // pred_check_branch
    %1414 = sbr.rel (0) target = $region65
  $region64: #{residual_block_2d.1} parent=0 // pred_region
    _
  $region65: #{residual_block_2d.1} parent=0 // pred_fallthru
    _

</llo_original>
